<compile_context>
chip_gen: v5e
topology: v5e:2x2
jax: 0.10.0
libtpu: 0.0.40
codegen_flags: <defaults>
</compile_context>

<pallas_src>
import functools

import jax
import jax.numpy as jnp
from jax.experimental import pallas as pl
from jax.experimental.pallas import tpu as pltpu


def _round_up(n, m):
    return ((n + m - 1) // m) * m


def _mlp_kernel(x_ref, w1_ref, b1_ref, w2_ref, b2_ref, w3_ref, b3_ref, o_ref):
    # fc1: (tb, Dp) @ (Dp, 1024) + (1, 1024)   -- f32 accumulation on the MXU
    h1 = jnp.dot(x_ref[...], w1_ref[...], preferred_element_type=jnp.float32)
    h1 = h1 + b1_ref[...]
    h1 = h1.astype(w2_ref.dtype)
    # fc2: (tb, 1024) @ (1024, 512) + (1, 512)
    h2 = jnp.dot(h1, w2_ref[...], preferred_element_type=jnp.float32)
    h2 = h2 + b2_ref[...]
    h2 = h2.astype(w3_ref.dtype)
    # fc3: (tb, 512) @ (512, Cp) + (1, Cp)  -- Cp is lane-dense (multiple of 128)
    out = jnp.dot(h2, w3_ref[...], preferred_element_type=jnp.float32)
    out = out + b3_ref[...]
    o_ref[...] = out.astype(o_ref.dtype)


@functools.partial(jax.jit, static_argnames=("use_bf16", "max_tile_b"))
def baseline_model1_forward(x, w1, b1, w2, b2, w3, b3, *, use_bf16=True, max_tile_b=256):
    B, D = x.shape
    H1 = w1.shape[1]
    H2 = w2.shape[1]
    C = w3.shape[1]

    cdtype = jnp.bfloat16 if use_bf16 else jnp.float32

    # Pad feature / class dims to lane-dense multiples of 128, batch to the tile.
    Dp = _round_up(D, 128)
    Cp = _round_up(C, 128)
    if B <= max_tile_b:
        tile_b = _round_up(B, 8)      # single grid step for small batches
        Bp = tile_b
    else:
        tile_b = max_tile_b
        Bp = _round_up(B, tile_b)

    xp = jnp.zeros((Bp, Dp), cdtype).at[:B, :D].set(x.astype(cdtype))
    w1p = jnp.zeros((Dp, H1), cdtype).at[:D, :].set(w1.astype(cdtype))
    w2p = w2.astype(cdtype)
    w3p = jnp.zeros((H2, Cp), cdtype).at[:, :C].set(w3.astype(cdtype))
    b1p = b1.reshape(1, H1).astype(jnp.float32)
    b2p = b2.reshape(1, H2).astype(jnp.float32)
    b3p = jnp.zeros((1, Cp), jnp.float32).at[0, :C].set(b3.reshape(C).astype(jnp.float32))

    num_tiles = Bp // tile_b
    grid = (num_tiles,)
    # Single-step grid: "arbitrary" (don't duplicate the weight DMA across v7x
    # TensorCores for one memory-bound step). Multi-step: shard batch tiles.
    semantics = ("parallel",) if num_tiles > 1 else ("arbitrary",)

    in_specs = [
        pl.BlockSpec((tile_b, Dp), lambda i: (i, 0)),   # x tile
        pl.BlockSpec((Dp, H1), lambda i: (0, 0)),       # W1 (resident)
        pl.BlockSpec((1, H1), lambda i: (0, 0)),        # b1
        pl.BlockSpec((H1, H2), lambda i: (0, 0)),       # W2 (resident)
        pl.BlockSpec((1, H2), lambda i: (0, 0)),        # b2
        pl.BlockSpec((H2, Cp), lambda i: (0, 0)),       # W3 (resident, lane-padded)
        pl.BlockSpec((1, Cp), lambda i: (0, 0)),        # b3 (lane-padded)
    ]
    out_spec = pl.BlockSpec((tile_b, Cp), lambda i: (i, 0))

    # Rough cost hint for the XLA scheduler (3 GEMMs, bf16 operands + f32 out).
    flops = 2 * Bp * (Dp * H1 + H1 * H2 + H2 * Cp)
    bytes_accessed = (
        xp.size * 2 + w1p.size * 2 + w2p.size * 2 + w3p.size * 2
        + b1p.size * 4 + b2p.size * 4 + b3p.size * 4 + Bp * Cp * 4
    )

    out_p = pl.pallas_call(
        _mlp_kernel,
        out_shape=jax.ShapeDtypeStruct((Bp, Cp), jnp.float32),
        grid=grid,
        in_specs=in_specs,
        out_specs=out_spec,
        compiler_params=pltpu.CompilerParams(
            dimension_semantics=semantics,
            vmem_limit_bytes=48 * 1024 * 1024,   # fits v5e/v6e/v7x budgets
        ),
        cost_estimate=pl.CostEstimate(
            flops=flops, transcendentals=0, bytes_accessed=bytes_accessed
        ),
    )(xp, w1p, b1p, w2p, b2p, w3p, b3p)

    # Strip batch / class padding outside the kernel.
    return out_p[:B, :C]


def init_params(key, inputsize, num_classes):
    """Deterministic init mimicking torch nn.Linear defaults (U[-1/sqrt(fan_in), 1/sqrt(fan_in)])."""
    ks = jax.random.split(key, 6)

    def lin(kw, kb, fan_in, fan_out):
        bound = 1.0 / (fan_in ** 0.5)
        w = jax.random.uniform(kw, (fan_in, fan_out), jnp.float32, -bound, bound)
        b = jax.random.uniform(kb, (1, fan_out), jnp.float32, -bound, bound)
        return w, b

    w1, b1 = lin(ks[0], ks[1], inputsize, 1024)
    w2, b2 = lin(ks[2], ks[3], 1024, 512)
    w3, b3 = lin(ks[4], ks[5], 512, num_classes)
    return w1, b1, w2, b2, w3, b3


if __name__ == "__main__":
    # Hidden dims 1024/512 are fixed by the module; inputsize/num_classes/batch are free.
    batch = 16
    inputsize = 256
    num_classes = 4

    key = jax.random.PRNGKey(0)
    kx, kp = jax.random.split(key)
    x = jax.random.normal(kx, (batch, inputsize), jnp.float32)
    w1, b1, w2, b2, w3, b3 = init_params(kp, inputsize, num_classes)

    out = baseline_model1_forward(x, w1, b1, w2, b2, w3, b3)
    out = jax.block_until_ready(out)

    # Reference in plain JAX mirroring the kernel's bf16 weight/activation casts
    # (f32 accumulation), same math as torch: fc3(fc2(fc1(x))).
    def _bf16(a):
        return a.astype(jnp.bfloat16).astype(jnp.float32)

    h1_ref = _bf16(_bf16(x) @ _bf16(w1) + b1)
    h2_ref = _bf16(h1_ref @ _bf16(w2) + b2)
    ref = h2_ref @ _bf16(w3) + b3

    assert out.shape == (batch, num_classes)
    assert jnp.allclose(out, ref, atol=1e-2, rtol=1e-2), "mismatch vs reference"

    print("KERNEL_OK")
</pallas_src>

<mosaic_0001>
module attributes {stable_mosaic.version = 11 : i64} {
  func.func @_mlp_kernel(%arg0: i32, %arg1: memref<16x256xbf16, #tpu.memory_space<vmem>>, %arg2: memref<256x1024xbf16, #tpu.memory_space<vmem>>, %arg3: memref<1x1024xf32, #tpu.memory_space<vmem>>, %arg4: memref<1024x512xbf16, #tpu.memory_space<vmem>>, %arg5: memref<1x512xf32, #tpu.memory_space<vmem>>, %arg6: memref<512x128xbf16, #tpu.memory_space<vmem>>, %arg7: memref<1x128xf32, #tpu.memory_space<vmem>>, %arg8: memref<16x128xf32, #tpu.memory_space<vmem>>) attributes {dimension_semantics = [#tpu.dimension_semantics<arbitrary>], iteration_bounds = array<i64: 1>, scalar_prefetch = 0 : i64, scratch_operands = 0 : i64, tpu.core_type = #tpu.core_type<tc>, window_params = [{transform_indices = @transform_0, window_bounds = array<i64: 16, 256>}, {pipeline_mode = #tpu.pipeline_mode<synchronous>, transform_indices = @transform_1, window_bounds = array<i64: 256, 1024>}, {pipeline_mode = #tpu.pipeline_mode<synchronous>, transform_indices = @transform_2, window_bounds = array<i64: 1, 1024>}, {pipeline_mode = #tpu.pipeline_mode<synchronous>, transform_indices = @transform_3, window_bounds = array<i64: 1024, 512>}, {pipeline_mode = #tpu.pipeline_mode<synchronous>, transform_indices = @transform_4, window_bounds = array<i64: 1, 512>}, {pipeline_mode = #tpu.pipeline_mode<synchronous>, transform_indices = @transform_5, window_bounds = array<i64: 512, 128>}, {pipeline_mode = #tpu.pipeline_mode<synchronous>, transform_indices = @transform_6, window_bounds = array<i64: 1, 128>}, {transform_indices = @transform_7, window_bounds = array<i64: 16, 128>}]} {
    %c0 = arith.constant 0 : index
    %c0_0 = arith.constant 0 : index
    %0 = vector.load %arg1[%c0, %c0_0] : memref<16x256xbf16, #tpu.memory_space<vmem>>, vector<16x256xbf16>
    %c0_1 = arith.constant 0 : index
    %c0_2 = arith.constant 0 : index
    %1 = vector.load %arg2[%c0_1, %c0_2] : memref<256x1024xbf16, #tpu.memory_space<vmem>>, vector<256x1024xbf16>
    %cst = arith.constant dense<0.000000e+00> : vector<16x1024xf32>
    %2 = tpu.matmul %0, %1, %cst {dimension_numbers = #tpu.dot_dimension_numbers<[1], [0], [0], [1], [0, 0, 1, 1], [], []>} : vector<16x256xbf16>, vector<256x1024xbf16>, vector<16x1024xf32> -> vector<16x1024xf32>
    %c0_3 = arith.constant 0 : index
    %c0_4 = arith.constant 0 : index
    %3 = vector.load %arg3[%c0_3, %c0_4] : memref<1x1024xf32, #tpu.memory_space<vmem>>, vector<1x1024xf32>
    %4 = vector.broadcast %3 : vector<1x1024xf32> to vector<16x1024xf32>
    %5 = arith.addf %2, %4 : vector<16x1024xf32>
    %6 = arith.truncf %5 : vector<16x1024xf32> to vector<16x1024xbf16>
    %c0_5 = arith.constant 0 : index
    %c0_6 = arith.constant 0 : index
    %7 = vector.load %arg4[%c0_5, %c0_6] : memref<1024x512xbf16, #tpu.memory_space<vmem>>, vector<1024x512xbf16>
    %cst_7 = arith.constant dense<0.000000e+00> : vector<16x512xf32>
    %8 = tpu.matmul %6, %7, %cst_7 {dimension_numbers = #tpu.dot_dimension_numbers<[1], [0], [0], [1], [0, 0, 1, 1], [], []>} : vector<16x1024xbf16>, vector<1024x512xbf16>, vector<16x512xf32> -> vector<16x512xf32>
    %c0_8 = arith.constant 0 : index
    %c0_9 = arith.constant 0 : index
    %9 = vector.load %arg5[%c0_8, %c0_9] : memref<1x512xf32, #tpu.memory_space<vmem>>, vector<1x512xf32>
    %10 = vector.broadcast %9 : vector<1x512xf32> to vector<16x512xf32>
    %11 = arith.addf %8, %10 : vector<16x512xf32>
    %12 = arith.truncf %11 : vector<16x512xf32> to vector<16x512xbf16>
    %c0_10 = arith.constant 0 : index
    %c0_11 = arith.constant 0 : index
    %13 = vector.load %arg6[%c0_10, %c0_11] : memref<512x128xbf16, #tpu.memory_space<vmem>>, vector<512x128xbf16>
    %cst_12 = arith.constant dense<0.000000e+00> : vector<16x128xf32>
    %14 = tpu.matmul %12, %13, %cst_12 {dimension_numbers = #tpu.dot_dimension_numbers<[1], [0], [0], [1], [0, 0, 1, 1], [], []>} : vector<16x512xbf16>, vector<512x128xbf16>, vector<16x128xf32> -> vector<16x128xf32>
    %c0_13 = arith.constant 0 : index
    %c0_14 = arith.constant 0 : index
    %15 = vector.load %arg7[%c0_13, %c0_14] : memref<1x128xf32, #tpu.memory_space<vmem>>, vector<1x128xf32>
    %16 = vector.broadcast %15 : vector<1x128xf32> to vector<16x128xf32>
    %17 = arith.addf %14, %16 : vector<16x128xf32>
    %c0_15 = arith.constant 0 : index
    %c0_16 = arith.constant 0 : index
    %18 = vector.load %arg8[%c0_15, %c0_16] : memref<16x128xf32, #tpu.memory_space<vmem>>, vector<16x128xf32>
    tpu.vector_store %arg8[%c0_15, %c0_16], %17 {strides = array<i32>} : memref<16x128xf32, #tpu.memory_space<vmem>>, vector<16x128xf32>,
    return
  }
  func.func @transform_0(%arg0: i32) -> (i32, i32) {
    %c0_i32 = arith.constant 0 : i32
    %c0_i32_0 = arith.constant 0 : i32
    return %arg0, %c0_i32 : i32, i32
  }
  func.func @transform_1(%arg0: i32) -> (i32, i32) {
    %c0_i32 = arith.constant 0 : i32
    %c0_i32_0 = arith.constant 0 : i32
    %c0_i32_1 = arith.constant 0 : i32
    return %c0_i32, %c0_i32_0 : i32, i32
  }
  func.func @transform_2(%arg0: i32) -> (i32, i32) {
    %c0_i32 = arith.constant 0 : i32
    %c0_i32_0 = arith.constant 0 : i32
    %c0_i32_1 = arith.constant 0 : i32
    return %c0_i32, %c0_i32_0 : i32, i32
  }
  func.func @transform_3(%arg0: i32) -> (i32, i32) {
    %c0_i32 = arith.constant 0 : i32
    %c0_i32_0 = arith.constant 0 : i32
    %c0_i32_1 = arith.constant 0 : i32
    return %c0_i32, %c0_i32_0 : i32, i32
  }
  func.func @transform_4(%arg0: i32) -> (i32, i32) {
    %c0_i32 = arith.constant 0 : i32
    %c0_i32_0 = arith.constant 0 : i32
    %c0_i32_1 = arith.constant 0 : i32
    return %c0_i32, %c0_i32_0 : i32, i32
  }
  func.func @transform_5(%arg0: i32) -> (i32, i32) {
    %c0_i32 = arith.constant 0 : i32
    %c0_i32_0 = arith.constant 0 : i32
    %c0_i32_1 = arith.constant 0 : i32
    return %c0_i32, %c0_i32_0 : i32, i32
  }
  func.func @transform_6(%arg0: i32) -> (i32, i32) {
    %c0_i32 = arith.constant 0 : i32
    %c0_i32_0 = arith.constant 0 : i32
    %c0_i32_1 = arith.constant 0 : i32
    return %c0_i32, %c0_i32_0 : i32, i32
  }
  func.func @transform_7(%arg0: i32) -> (i32, i32) {
    %c0_i32 = arith.constant 0 : i32
    %c0_i32_0 = arith.constant 0 : i32
    return %arg0, %c0_i32 : i32, i32
  }
}

</mosaic_0001>

<llo_original>
// kernel: baseline_model1_forward.1
$region0: #{baseline_model1_forward.1}
  #allocation0 [shape = 'u32[]', space=smem, size = 0x4, offset = 0x4, fixed_abs, tag = 'smem constant byte address 0x4 - core index']
  #allocation1 [shape = 'u32[72,128]{1,0:T(1,128)}', space=vmem, size = 0x9000, scoped, tag = 'internal scratch']
  %s0 = inlined_call_operand.vmem [shape: bf16[16,256], index: 0, kind: input, shape index: {}]
  %s1 = inlined_call_operand.vmem [shape: bf16[256,1024], index: 1, kind: input, shape index: {}]
  %s2 = inlined_call_operand.vmem [shape: f32[1,1024], index: 2, kind: input, shape index: {}]
  %s3 = inlined_call_operand.vmem [shape: bf16[1024,512], index: 3, kind: input, shape index: {}]
  %s4 = inlined_call_operand.vmem [shape: f32[1,512], index: 4, kind: input, shape index: {}]
  %s5 = inlined_call_operand.vmem [shape: bf16[512,128], index: 5, kind: input, shape index: {}]
  %s6 = inlined_call_operand.vmem [shape: f32[1,128], index: 6, kind: input, shape index: {}]
  %s7 = inlined_call_operand.vmem [shape: f32[16,128], index: 7, kind: output, shape index: {}]
  %s8 = sld [smem:[#allocation0]]
  $region38: #{baseline_model1_forward.1} parent=0
    _
  %s10 = ssub.s32 1, %s8
  %s11 = scalar_select 0, %s10, %s8
  // Predicated region
  $region2: #{baseline_model1_forward.1} parent=0 // pred_check
    _
  $region3: #{baseline_model1_forward.1} parent=0 // pred_check_branch
    %13 = sbr.rel (0) target = $region5
  $region4: #{baseline_model1_forward.1} parent=0 // pred_region
    _
  $region5: #{baseline_model1_forward.1} parent=0 // pred_fallthru
    _
  // Predicated region
  $region6: #{baseline_model1_forward.1} parent=0 // pred_check
    _
  $region7: #{baseline_model1_forward.1} parent=0 // pred_check_branch
    %15 = sbr.rel (0) target = $region9
  $region8: #{baseline_model1_forward.1} parent=0 // pred_region
    _
  $region9: #{baseline_model1_forward.1} parent=0 // pred_fallthru
    _
  // Predicated region
  $region10: #{baseline_model1_forward.1} parent=0 // pred_check
    _
  $region11: #{baseline_model1_forward.1} parent=0 // pred_check_branch
    %17 = sbr.rel (0) target = $region13
  $region12: #{baseline_model1_forward.1} parent=0 // pred_region
    _
  $region13: #{baseline_model1_forward.1} parent=0 // pred_fallthru
    _
  // Predicated region
  $region14: #{baseline_model1_forward.1} parent=0 // pred_check
    _
  $region15: #{baseline_model1_forward.1} parent=0 // pred_check_branch
    %19 = sbr.rel (0) target = $region17
  $region16: #{baseline_model1_forward.1} parent=0 // pred_region
    _
  $region17: #{baseline_model1_forward.1} parent=0 // pred_fallthru
    _
  // Predicated region
  $region18: #{baseline_model1_forward.1} parent=0 // pred_check
    _
  $region19: #{baseline_model1_forward.1} parent=0 // pred_check_branch
    %21 = sbr.rel (0) target = $region21
  $region20: #{baseline_model1_forward.1} parent=0 // pred_region
    _
  $region21: #{baseline_model1_forward.1} parent=0 // pred_fallthru
    _
  // Predicated region
  $region22: #{baseline_model1_forward.1} parent=0 // pred_check
    _
  $region23: #{baseline_model1_forward.1} parent=0 // pred_check_branch
    %23 = sbr.rel (0) target = $region25
  $region24: #{baseline_model1_forward.1} parent=0 // pred_region
    _
  $region25: #{baseline_model1_forward.1} parent=0 // pred_fallthru
    _
  // Predicated region
  $region26: #{baseline_model1_forward.1} parent=0 // pred_check
    _
  $region27: #{baseline_model1_forward.1} parent=0 // pred_check_branch
    %25 = sbr.rel (0) target = $region29
  $region28: #{baseline_model1_forward.1} parent=0 // pred_region
    _
  $region29: #{baseline_model1_forward.1} parent=0 // pred_fallthru
    _
  %v26 = vld [vmem:[%s0] sm:$0xff]
  %v27 = vld [vmem:[%s0 + $0x8] sm:$0xff]
  %v28 = vld [vmem:[%s1] sm:$0xff]
  %v29 = vld [vmem:[%s1 + $0x8] sm:$0xff]
  %v30 = vld [vmem:[%s1 + $0x10] sm:$0xff]
  %v31 = vld [vmem:[%s1 + $0x18] sm:$0xff]
  %v32 = vld [vmem:[%s1 + $0x20] sm:$0xff]
  %v33 = vld [vmem:[%s1 + $0x28] sm:$0xff]
  %v34 = vld [vmem:[%s1 + $0x30] sm:$0xff]
  %v35 = vld [vmem:[%s1 + $0x38] sm:$0xff]
  %v36 = vld [vmem:[%s1 + $0x40] sm:$0xff]
  %v37 = vld [vmem:[%s1 + $0x48] sm:$0xff]
  %v38 = vld [vmem:[%s1 + $0x50] sm:$0xff]
  %v39 = vld [vmem:[%s1 + $0x58] sm:$0xff]
  %v40 = vld [vmem:[%s1 + $0x60] sm:$0xff]
  %v41 = vld [vmem:[%s1 + $0x68] sm:$0xff]
  %v42 = vld [vmem:[%s1 + $0x70] sm:$0xff]
  %v43 = vld [vmem:[%s1 + $0x78] sm:$0xff]
  %v44 = vld [vmem:[%s1 + $0x80] sm:$0xff]
  %v45 = vld [vmem:[%s1 + $0x88] sm:$0xff]
  %v46 = vld [vmem:[%s1 + $0x90] sm:$0xff]
  %v47 = vld [vmem:[%s1 + $0x98] sm:$0xff]
  %v48 = vld [vmem:[%s1 + $0xa0] sm:$0xff]
  %v49 = vld [vmem:[%s1 + $0xa8] sm:$0xff]
  %v50 = vld [vmem:[%s1 + $0xb0] sm:$0xff]
  %v51 = vld [vmem:[%s1 + $0xb8] sm:$0xff]
  %v52 = vld [vmem:[%s1 + $0xc0] sm:$0xff]
  %v53 = vld [vmem:[%s1 + $0xc8] sm:$0xff]
  %v54 = vld [vmem:[%s1 + $0xd0] sm:$0xff]
  %v55 = vld [vmem:[%s1 + $0xd8] sm:$0xff]
  %v56 = vld [vmem:[%s1 + $0xe0] sm:$0xff]
  %v57 = vld [vmem:[%s1 + $0xe8] sm:$0xff]
  %v58 = vld [vmem:[%s1 + $0xf0] sm:$0xff]
  %v59 = vld [vmem:[%s1 + $0xf8] sm:$0xff]
  %v60 = vld [vmem:[%s1 + $0x100] sm:$0xff]
  %v61 = vld [vmem:[%s1 + $0x108] sm:$0xff]
  %v62 = vld [vmem:[%s1 + $0x110] sm:$0xff]
  %v63 = vld [vmem:[%s1 + $0x118] sm:$0xff]
  %v64 = vld [vmem:[%s1 + $0x120] sm:$0xff]
  %v65 = vld [vmem:[%s1 + $0x128] sm:$0xff]
  %v66 = vld [vmem:[%s1 + $0x130] sm:$0xff]
  %v67 = vld [vmem:[%s1 + $0x138] sm:$0xff]
  %v68 = vld [vmem:[%s1 + $0x140] sm:$0xff]
  %v69 = vld [vmem:[%s1 + $0x148] sm:$0xff]
  %v70 = vld [vmem:[%s1 + $0x150] sm:$0xff]
  %v71 = vld [vmem:[%s1 + $0x158] sm:$0xff]
  %v72 = vld [vmem:[%s1 + $0x160] sm:$0xff]
  %v73 = vld [vmem:[%s1 + $0x168] sm:$0xff]
  %v74 = vld [vmem:[%s1 + $0x170] sm:$0xff]
  %v75 = vld [vmem:[%s1 + $0x178] sm:$0xff]
  %v76 = vld [vmem:[%s1 + $0x180] sm:$0xff]
  %v77 = vld [vmem:[%s1 + $0x188] sm:$0xff]
  %v78 = vld [vmem:[%s1 + $0x190] sm:$0xff]
  %v79 = vld [vmem:[%s1 + $0x198] sm:$0xff]
  %v80 = vld [vmem:[%s1 + $0x1a0] sm:$0xff]
  %v81 = vld [vmem:[%s1 + $0x1a8] sm:$0xff]
  %v82 = vld [vmem:[%s1 + $0x1b0] sm:$0xff]
  %v83 = vld [vmem:[%s1 + $0x1b8] sm:$0xff]
  %v84 = vld [vmem:[%s1 + $0x1c0] sm:$0xff]
  %v85 = vld [vmem:[%s1 + $0x1c8] sm:$0xff]
  %v86 = vld [vmem:[%s1 + $0x1d0] sm:$0xff]
  %v87 = vld [vmem:[%s1 + $0x1d8] sm:$0xff]
  %v88 = vld [vmem:[%s1 + $0x1e0] sm:$0xff]
  %v89 = vld [vmem:[%s1 + $0x1e8] sm:$0xff]
  %v90 = vld [vmem:[%s1 + $0x1f0] sm:$0xff]
  %v91 = vld [vmem:[%s1 + $0x1f8] sm:$0xff]
  %v92 = vld [vmem:[%s1 + $0x200] sm:$0xff]
  %v93 = vld [vmem:[%s1 + $0x208] sm:$0xff]
  %v94 = vld [vmem:[%s1 + $0x210] sm:$0xff]
  %v95 = vld [vmem:[%s1 + $0x218] sm:$0xff]
  %v96 = vld [vmem:[%s1 + $0x220] sm:$0xff]
  %v97 = vld [vmem:[%s1 + $0x228] sm:$0xff]
  %v98 = vld [vmem:[%s1 + $0x230] sm:$0xff]
  %v99 = vld [vmem:[%s1 + $0x238] sm:$0xff]
  %v100 = vld [vmem:[%s1 + $0x240] sm:$0xff]
  %v101 = vld [vmem:[%s1 + $0x248] sm:$0xff]
  %v102 = vld [vmem:[%s1 + $0x250] sm:$0xff]
  %v103 = vld [vmem:[%s1 + $0x258] sm:$0xff]
  %v104 = vld [vmem:[%s1 + $0x260] sm:$0xff]
  %v105 = vld [vmem:[%s1 + $0x268] sm:$0xff]
  %v106 = vld [vmem:[%s1 + $0x270] sm:$0xff]
  %v107 = vld [vmem:[%s1 + $0x278] sm:$0xff]
  %v108 = vld [vmem:[%s1 + $0x280] sm:$0xff]
  %v109 = vld [vmem:[%s1 + $0x288] sm:$0xff]
  %v110 = vld [vmem:[%s1 + $0x290] sm:$0xff]
  %v111 = vld [vmem:[%s1 + $0x298] sm:$0xff]
  %v112 = vld [vmem:[%s1 + $0x2a0] sm:$0xff]
  %v113 = vld [vmem:[%s1 + $0x2a8] sm:$0xff]
  %v114 = vld [vmem:[%s1 + $0x2b0] sm:$0xff]
  %v115 = vld [vmem:[%s1 + $0x2b8] sm:$0xff]
  %v116 = vld [vmem:[%s1 + $0x2c0] sm:$0xff]
  %v117 = vld [vmem:[%s1 + $0x2c8] sm:$0xff]
  %v118 = vld [vmem:[%s1 + $0x2d0] sm:$0xff]
  %v119 = vld [vmem:[%s1 + $0x2d8] sm:$0xff]
  %v120 = vld [vmem:[%s1 + $0x2e0] sm:$0xff]
  %v121 = vld [vmem:[%s1 + $0x2e8] sm:$0xff]
  %v122 = vld [vmem:[%s1 + $0x2f0] sm:$0xff]
  %v123 = vld [vmem:[%s1 + $0x2f8] sm:$0xff]
  %v124 = vld [vmem:[%s1 + $0x300] sm:$0xff]
  %v125 = vld [vmem:[%s1 + $0x308] sm:$0xff]
  %v126 = vld [vmem:[%s1 + $0x310] sm:$0xff]
  %v127 = vld [vmem:[%s1 + $0x318] sm:$0xff]
  %v128 = vld [vmem:[%s1 + $0x320] sm:$0xff]
  %v129 = vld [vmem:[%s1 + $0x328] sm:$0xff]
  %v130 = vld [vmem:[%s1 + $0x330] sm:$0xff]
  %v131 = vld [vmem:[%s1 + $0x338] sm:$0xff]
  %v132 = vld [vmem:[%s1 + $0x340] sm:$0xff]
  %v133 = vld [vmem:[%s1 + $0x348] sm:$0xff]
  %v134 = vld [vmem:[%s1 + $0x350] sm:$0xff]
  %v135 = vld [vmem:[%s1 + $0x358] sm:$0xff]
  %v136 = vld [vmem:[%s1 + $0x360] sm:$0xff]
  %v137 = vld [vmem:[%s1 + $0x368] sm:$0xff]
  %v138 = vld [vmem:[%s1 + $0x370] sm:$0xff]
  %v139 = vld [vmem:[%s1 + $0x378] sm:$0xff]
  %v140 = vld [vmem:[%s1 + $0x380] sm:$0xff]
  %v141 = vld [vmem:[%s1 + $0x388] sm:$0xff]
  %v142 = vld [vmem:[%s1 + $0x390] sm:$0xff]
  %v143 = vld [vmem:[%s1 + $0x398] sm:$0xff]
  %v144 = vld [vmem:[%s1 + $0x3a0] sm:$0xff]
  %v145 = vld [vmem:[%s1 + $0x3a8] sm:$0xff]
  %v146 = vld [vmem:[%s1 + $0x3b0] sm:$0xff]
  %v147 = vld [vmem:[%s1 + $0x3b8] sm:$0xff]
  %v148 = vld [vmem:[%s1 + $0x3c0] sm:$0xff]
  %v149 = vld [vmem:[%s1 + $0x3c8] sm:$0xff]
  %v150 = vld [vmem:[%s1 + $0x3d0] sm:$0xff]
  %v151 = vld [vmem:[%s1 + $0x3d8] sm:$0xff]
  %v152 = vld [vmem:[%s1 + $0x3e0] sm:$0xff]
  %v153 = vld [vmem:[%s1 + $0x3e8] sm:$0xff]
  %v154 = vld [vmem:[%s1 + $0x3f0] sm:$0xff]
  %v155 = vld [vmem:[%s1 + $0x3f8] sm:$0xff]
  %v156 = vld [vmem:[%s2] sm:$0xff]
  %v158 = vperm.slane %v156, 0
  %v159 = vperm.slane %v156, 1
  %v160 = vperm.slane %v156, 2
  %v161 = vperm.slane %v156, 3
  %v162 = vperm.slane %v156, 4
  %v163 = vperm.slane %v156, 5
  %v164 = vperm.slane %v156, 6
  %v165 = vperm.slane %v156, 7
  %v176 = vunpack.c.l.b16 %v26
  %v177 = vunpack.c.h.b16 %v26
  %v178 = vunpack.c.l.b16 %v27
  %v179 = vunpack.c.h.b16 %v27
  %v180 = vpack.c.b16 %v178, %v176
  %v181 = vpack.c.b16 %v179, %v177
  %v312 = vunpack.c.l.b16 %v28
  %v313 = vunpack.c.h.b16 %v28
  %v314 = vunpack.c.l.b16 %v29
  %v315 = vunpack.c.h.b16 %v29
  %v316 = vunpack.c.l.b16 %v30
  %v317 = vunpack.c.h.b16 %v30
  %v318 = vunpack.c.l.b16 %v31
  %v319 = vunpack.c.h.b16 %v31
  %v320 = vunpack.c.l.b16 %v32
  %v321 = vunpack.c.h.b16 %v32
  %v322 = vunpack.c.l.b16 %v33
  %v323 = vunpack.c.h.b16 %v33
  %v324 = vunpack.c.l.b16 %v34
  %v325 = vunpack.c.h.b16 %v34
  %v326 = vunpack.c.l.b16 %v35
  %v327 = vunpack.c.h.b16 %v35
  %v328 = vunpack.c.l.b16 %v36
  %v329 = vunpack.c.h.b16 %v36
  %v330 = vunpack.c.l.b16 %v37
  %v331 = vunpack.c.h.b16 %v37
  %v332 = vunpack.c.l.b16 %v38
  %v333 = vunpack.c.h.b16 %v38
  %v334 = vunpack.c.l.b16 %v39
  %v335 = vunpack.c.h.b16 %v39
  %v336 = vunpack.c.l.b16 %v40
  %v337 = vunpack.c.h.b16 %v40
  %v338 = vunpack.c.l.b16 %v41
  %v339 = vunpack.c.h.b16 %v41
  %v340 = vunpack.c.l.b16 %v42
  %v341 = vunpack.c.h.b16 %v42
  %v342 = vunpack.c.l.b16 %v43
  %v343 = vunpack.c.h.b16 %v43
  %v344 = vunpack.c.l.b16 %v44
  %v345 = vunpack.c.h.b16 %v44
  %v346 = vunpack.c.l.b16 %v45
  %v347 = vunpack.c.h.b16 %v45
  %v348 = vunpack.c.l.b16 %v46
  %v349 = vunpack.c.h.b16 %v46
  %v350 = vunpack.c.l.b16 %v47
  %v351 = vunpack.c.h.b16 %v47
  %v352 = vunpack.c.l.b16 %v48
  %v353 = vunpack.c.h.b16 %v48
  %v354 = vunpack.c.l.b16 %v49
  %v355 = vunpack.c.h.b16 %v49
  %v356 = vunpack.c.l.b16 %v50
  %v357 = vunpack.c.h.b16 %v50
  %v358 = vunpack.c.l.b16 %v51
  %v359 = vunpack.c.h.b16 %v51
  %v360 = vunpack.c.l.b16 %v52
  %v361 = vunpack.c.h.b16 %v52
  %v362 = vunpack.c.l.b16 %v53
  %v363 = vunpack.c.h.b16 %v53
  %v364 = vunpack.c.l.b16 %v54
  %v365 = vunpack.c.h.b16 %v54
  %v366 = vunpack.c.l.b16 %v55
  %v367 = vunpack.c.h.b16 %v55
  %v368 = vunpack.c.l.b16 %v56
  %v369 = vunpack.c.h.b16 %v56
  %v370 = vunpack.c.l.b16 %v57
  %v371 = vunpack.c.h.b16 %v57
  %v372 = vunpack.c.l.b16 %v58
  %v373 = vunpack.c.h.b16 %v58
  %v374 = vunpack.c.l.b16 %v59
  %v375 = vunpack.c.h.b16 %v59
  %v376 = vunpack.c.l.b16 %v60
  %v377 = vunpack.c.h.b16 %v60
  %v378 = vunpack.c.l.b16 %v61
  %v379 = vunpack.c.h.b16 %v61
  %v380 = vunpack.c.l.b16 %v62
  %v381 = vunpack.c.h.b16 %v62
  %v382 = vunpack.c.l.b16 %v63
  %v383 = vunpack.c.h.b16 %v63
  %v384 = vunpack.c.l.b16 %v64
  %v385 = vunpack.c.h.b16 %v64
  %v386 = vunpack.c.l.b16 %v65
  %v387 = vunpack.c.h.b16 %v65
  %v388 = vunpack.c.l.b16 %v66
  %v389 = vunpack.c.h.b16 %v66
  %v390 = vunpack.c.l.b16 %v67
  %v391 = vunpack.c.h.b16 %v67
  %v392 = vunpack.c.l.b16 %v68
  %v393 = vunpack.c.h.b16 %v68
  %v394 = vunpack.c.l.b16 %v69
  %v395 = vunpack.c.h.b16 %v69
  %v396 = vunpack.c.l.b16 %v70
  %v397 = vunpack.c.h.b16 %v70
  %v398 = vunpack.c.l.b16 %v71
  %v399 = vunpack.c.h.b16 %v71
  %v400 = vunpack.c.l.b16 %v72
  %v401 = vunpack.c.h.b16 %v72
  %v402 = vunpack.c.l.b16 %v73
  %v403 = vunpack.c.h.b16 %v73
  %v404 = vunpack.c.l.b16 %v74
  %v405 = vunpack.c.h.b16 %v74
  %v406 = vunpack.c.l.b16 %v75
  %v407 = vunpack.c.h.b16 %v75
  %v408 = vunpack.c.l.b16 %v76
  %v409 = vunpack.c.h.b16 %v76
  %v410 = vunpack.c.l.b16 %v77
  %v411 = vunpack.c.h.b16 %v77
  %v412 = vunpack.c.l.b16 %v78
  %v413 = vunpack.c.h.b16 %v78
  %v414 = vunpack.c.l.b16 %v79
  %v415 = vunpack.c.h.b16 %v79
  %v416 = vunpack.c.l.b16 %v80
  %v417 = vunpack.c.h.b16 %v80
  %v418 = vunpack.c.l.b16 %v81
  %v419 = vunpack.c.h.b16 %v81
  %v420 = vunpack.c.l.b16 %v82
  %v421 = vunpack.c.h.b16 %v82
  %v422 = vunpack.c.l.b16 %v83
  %v423 = vunpack.c.h.b16 %v83
  %v424 = vunpack.c.l.b16 %v84
  %v425 = vunpack.c.h.b16 %v84
  %v426 = vunpack.c.l.b16 %v85
  %v427 = vunpack.c.h.b16 %v85
  %v428 = vunpack.c.l.b16 %v86
  %v429 = vunpack.c.h.b16 %v86
  %v430 = vunpack.c.l.b16 %v87
  %v431 = vunpack.c.h.b16 %v87
  %v432 = vunpack.c.l.b16 %v88
  %v433 = vunpack.c.h.b16 %v88
  %v434 = vunpack.c.l.b16 %v89
  %v435 = vunpack.c.h.b16 %v89
  %v436 = vunpack.c.l.b16 %v90
  %v437 = vunpack.c.h.b16 %v90
  %v438 = vunpack.c.l.b16 %v91
  %v439 = vunpack.c.h.b16 %v91
  %v440 = vunpack.c.l.b16 %v92
  %v441 = vunpack.c.h.b16 %v92
  %v442 = vunpack.c.l.b16 %v93
  %v443 = vunpack.c.h.b16 %v93
  %v444 = vunpack.c.l.b16 %v94
  %v445 = vunpack.c.h.b16 %v94
  %v446 = vunpack.c.l.b16 %v95
  %v447 = vunpack.c.h.b16 %v95
  %v448 = vunpack.c.l.b16 %v96
  %v449 = vunpack.c.h.b16 %v96
  %v450 = vunpack.c.l.b16 %v97
  %v451 = vunpack.c.h.b16 %v97
  %v452 = vunpack.c.l.b16 %v98
  %v453 = vunpack.c.h.b16 %v98
  %v454 = vunpack.c.l.b16 %v99
  %v455 = vunpack.c.h.b16 %v99
  %v456 = vunpack.c.l.b16 %v100
  %v457 = vunpack.c.h.b16 %v100
  %v458 = vunpack.c.l.b16 %v101
  %v459 = vunpack.c.h.b16 %v101
  %v460 = vunpack.c.l.b16 %v102
  %v461 = vunpack.c.h.b16 %v102
  %v462 = vunpack.c.l.b16 %v103
  %v463 = vunpack.c.h.b16 %v103
  %v464 = vunpack.c.l.b16 %v104
  %v465 = vunpack.c.h.b16 %v104
  %v466 = vunpack.c.l.b16 %v105
  %v467 = vunpack.c.h.b16 %v105
  %v468 = vunpack.c.l.b16 %v106
  %v469 = vunpack.c.h.b16 %v106
  %v470 = vunpack.c.l.b16 %v107
  %v471 = vunpack.c.h.b16 %v107
  %v472 = vunpack.c.l.b16 %v108
  %v473 = vunpack.c.h.b16 %v108
  %v474 = vunpack.c.l.b16 %v109
  %v475 = vunpack.c.h.b16 %v109
  %v476 = vunpack.c.l.b16 %v110
  %v477 = vunpack.c.h.b16 %v110
  %v478 = vunpack.c.l.b16 %v111
  %v479 = vunpack.c.h.b16 %v111
  %v480 = vunpack.c.l.b16 %v112
  %v481 = vunpack.c.h.b16 %v112
  %v482 = vunpack.c.l.b16 %v113
  %v483 = vunpack.c.h.b16 %v113
  %v484 = vunpack.c.l.b16 %v114
  %v485 = vunpack.c.h.b16 %v114
  %v486 = vunpack.c.l.b16 %v115
  %v487 = vunpack.c.h.b16 %v115
  %v488 = vunpack.c.l.b16 %v116
  %v489 = vunpack.c.h.b16 %v116
  %v490 = vunpack.c.l.b16 %v117
  %v491 = vunpack.c.h.b16 %v117
  %v492 = vunpack.c.l.b16 %v118
  %v493 = vunpack.c.h.b16 %v118
  %v494 = vunpack.c.l.b16 %v119
  %v495 = vunpack.c.h.b16 %v119
  %v496 = vunpack.c.l.b16 %v120
  %v497 = vunpack.c.h.b16 %v120
  %v498 = vunpack.c.l.b16 %v121
  %v499 = vunpack.c.h.b16 %v121
  %v500 = vunpack.c.l.b16 %v122
  %v501 = vunpack.c.h.b16 %v122
  %v502 = vunpack.c.l.b16 %v123
  %v503 = vunpack.c.h.b16 %v123
  %v504 = vunpack.c.l.b16 %v124
  %v505 = vunpack.c.h.b16 %v124
  %v506 = vunpack.c.l.b16 %v125
  %v507 = vunpack.c.h.b16 %v125
  %v508 = vunpack.c.l.b16 %v126
  %v509 = vunpack.c.h.b16 %v126
  %v510 = vunpack.c.l.b16 %v127
  %v511 = vunpack.c.h.b16 %v127
  %v512 = vunpack.c.l.b16 %v128
  %v513 = vunpack.c.h.b16 %v128
  %v514 = vunpack.c.l.b16 %v129
  %v515 = vunpack.c.h.b16 %v129
  %v516 = vunpack.c.l.b16 %v130
  %v517 = vunpack.c.h.b16 %v130
  %v518 = vunpack.c.l.b16 %v131
  %v519 = vunpack.c.h.b16 %v131
  %v520 = vunpack.c.l.b16 %v132
  %v521 = vunpack.c.h.b16 %v132
  %v522 = vunpack.c.l.b16 %v133
  %v523 = vunpack.c.h.b16 %v133
  %v524 = vunpack.c.l.b16 %v134
  %v525 = vunpack.c.h.b16 %v134
  %v526 = vunpack.c.l.b16 %v135
  %v527 = vunpack.c.h.b16 %v135
  %v528 = vunpack.c.l.b16 %v136
  %v529 = vunpack.c.h.b16 %v136
  %v530 = vunpack.c.l.b16 %v137
  %v531 = vunpack.c.h.b16 %v137
  %v532 = vunpack.c.l.b16 %v138
  %v533 = vunpack.c.h.b16 %v138
  %v534 = vunpack.c.l.b16 %v139
  %v535 = vunpack.c.h.b16 %v139
  %v536 = vunpack.c.l.b16 %v140
  %v537 = vunpack.c.h.b16 %v140
  %v538 = vunpack.c.l.b16 %v141
  %v539 = vunpack.c.h.b16 %v141
  %v540 = vunpack.c.l.b16 %v142
  %v541 = vunpack.c.h.b16 %v142
  %v542 = vunpack.c.l.b16 %v143
  %v543 = vunpack.c.h.b16 %v143
  %v544 = vunpack.c.l.b16 %v144
  %v545 = vunpack.c.h.b16 %v144
  %v546 = vunpack.c.l.b16 %v145
  %v547 = vunpack.c.h.b16 %v145
  %v548 = vunpack.c.l.b16 %v146
  %v549 = vunpack.c.h.b16 %v146
  %v550 = vunpack.c.l.b16 %v147
  %v551 = vunpack.c.h.b16 %v147
  %v552 = vunpack.c.l.b16 %v148
  %v553 = vunpack.c.h.b16 %v148
  %v554 = vunpack.c.l.b16 %v149
  %v555 = vunpack.c.h.b16 %v149
  %v556 = vunpack.c.l.b16 %v150
  %v557 = vunpack.c.h.b16 %v150
  %v558 = vunpack.c.l.b16 %v151
  %v559 = vunpack.c.h.b16 %v151
  %v560 = vunpack.c.l.b16 %v152
  %v561 = vunpack.c.h.b16 %v152
  %v562 = vunpack.c.l.b16 %v153
  %v563 = vunpack.c.h.b16 %v153
  %v564 = vunpack.c.l.b16 %v154
  %v565 = vunpack.c.h.b16 %v154
  %v566 = vunpack.c.l.b16 %v155
  %v567 = vunpack.c.h.b16 %v155
  %v568 = vpack.c.b16 %v320, %v312
  %v569 = vpack.c.b16 %v321, %v313
  %v570 = vpack.c.b16 %v322, %v314
  %v571 = vpack.c.b16 %v323, %v315
  %v572 = vpack.c.b16 %v324, %v316
  %v573 = vpack.c.b16 %v325, %v317
  %v574 = vpack.c.b16 %v326, %v318
  %v575 = vpack.c.b16 %v327, %v319
  %v576 = vpack.c.b16 %v336, %v328
  %v577 = vpack.c.b16 %v337, %v329
  %v578 = vpack.c.b16 %v338, %v330
  %v579 = vpack.c.b16 %v339, %v331
  %v580 = vpack.c.b16 %v340, %v332
  %v581 = vpack.c.b16 %v341, %v333
  %v582 = vpack.c.b16 %v342, %v334
  %v583 = vpack.c.b16 %v343, %v335
  %v584 = vpack.c.b16 %v352, %v344
  %v585 = vpack.c.b16 %v353, %v345
  %v586 = vpack.c.b16 %v354, %v346
  %v587 = vpack.c.b16 %v355, %v347
  %v588 = vpack.c.b16 %v356, %v348
  %v589 = vpack.c.b16 %v357, %v349
  %v590 = vpack.c.b16 %v358, %v350
  %v591 = vpack.c.b16 %v359, %v351
  %v592 = vpack.c.b16 %v368, %v360
  %v593 = vpack.c.b16 %v369, %v361
  %v594 = vpack.c.b16 %v370, %v362
  %v595 = vpack.c.b16 %v371, %v363
  %v596 = vpack.c.b16 %v372, %v364
  %v597 = vpack.c.b16 %v373, %v365
  %v598 = vpack.c.b16 %v374, %v366
  %v599 = vpack.c.b16 %v375, %v367
  %v600 = vpack.c.b16 %v384, %v376
  %v601 = vpack.c.b16 %v385, %v377
  %v602 = vpack.c.b16 %v386, %v378
  %v603 = vpack.c.b16 %v387, %v379
  %v604 = vpack.c.b16 %v388, %v380
  %v605 = vpack.c.b16 %v389, %v381
  %v606 = vpack.c.b16 %v390, %v382
  %v607 = vpack.c.b16 %v391, %v383
  %v608 = vpack.c.b16 %v400, %v392
  %v609 = vpack.c.b16 %v401, %v393
  %v610 = vpack.c.b16 %v402, %v394
  %v611 = vpack.c.b16 %v403, %v395
  %v612 = vpack.c.b16 %v404, %v396
  %v613 = vpack.c.b16 %v405, %v397
  %v614 = vpack.c.b16 %v406, %v398
  %v615 = vpack.c.b16 %v407, %v399
  %v616 = vpack.c.b16 %v416, %v408
  %v617 = vpack.c.b16 %v417, %v409
  %v618 = vpack.c.b16 %v418, %v410
  %v619 = vpack.c.b16 %v419, %v411
  %v620 = vpack.c.b16 %v420, %v412
  %v621 = vpack.c.b16 %v421, %v413
  %v622 = vpack.c.b16 %v422, %v414
  %v623 = vpack.c.b16 %v423, %v415
  %v624 = vpack.c.b16 %v432, %v424
  %v625 = vpack.c.b16 %v433, %v425
  %v626 = vpack.c.b16 %v434, %v426
  %v627 = vpack.c.b16 %v435, %v427
  %v628 = vpack.c.b16 %v436, %v428
  %v629 = vpack.c.b16 %v437, %v429
  %v630 = vpack.c.b16 %v438, %v430
  %v631 = vpack.c.b16 %v439, %v431
  %v632 = vpack.c.b16 %v448, %v440
  %v633 = vpack.c.b16 %v449, %v441
  %v634 = vpack.c.b16 %v450, %v442
  %v635 = vpack.c.b16 %v451, %v443
  %v636 = vpack.c.b16 %v452, %v444
  %v637 = vpack.c.b16 %v453, %v445
  %v638 = vpack.c.b16 %v454, %v446
  %v639 = vpack.c.b16 %v455, %v447
  %v640 = vpack.c.b16 %v464, %v456
  %v641 = vpack.c.b16 %v465, %v457
  %v642 = vpack.c.b16 %v466, %v458
  %v643 = vpack.c.b16 %v467, %v459
  %v644 = vpack.c.b16 %v468, %v460
  %v645 = vpack.c.b16 %v469, %v461
  %v646 = vpack.c.b16 %v470, %v462
  %v647 = vpack.c.b16 %v471, %v463
  %v648 = vpack.c.b16 %v480, %v472
  %v649 = vpack.c.b16 %v481, %v473
  %v650 = vpack.c.b16 %v482, %v474
  %v651 = vpack.c.b16 %v483, %v475
  %v652 = vpack.c.b16 %v484, %v476
  %v653 = vpack.c.b16 %v485, %v477
  %v654 = vpack.c.b16 %v486, %v478
  %v655 = vpack.c.b16 %v487, %v479
  %v656 = vpack.c.b16 %v496, %v488
  %v657 = vpack.c.b16 %v497, %v489
  %v658 = vpack.c.b16 %v498, %v490
  %v659 = vpack.c.b16 %v499, %v491
  %v660 = vpack.c.b16 %v500, %v492
  %v661 = vpack.c.b16 %v501, %v493
  %v662 = vpack.c.b16 %v502, %v494
  %v663 = vpack.c.b16 %v503, %v495
  %v664 = vpack.c.b16 %v512, %v504
  %v665 = vpack.c.b16 %v513, %v505
  %v666 = vpack.c.b16 %v514, %v506
  %v667 = vpack.c.b16 %v515, %v507
  %v668 = vpack.c.b16 %v516, %v508
  %v669 = vpack.c.b16 %v517, %v509
  %v670 = vpack.c.b16 %v518, %v510
  %v671 = vpack.c.b16 %v519, %v511
  %v672 = vpack.c.b16 %v528, %v520
  %v673 = vpack.c.b16 %v529, %v521
  %v674 = vpack.c.b16 %v530, %v522
  %v675 = vpack.c.b16 %v531, %v523
  %v676 = vpack.c.b16 %v532, %v524
  %v677 = vpack.c.b16 %v533, %v525
  %v678 = vpack.c.b16 %v534, %v526
  %v679 = vpack.c.b16 %v535, %v527
  %v680 = vpack.c.b16 %v544, %v536
  %v681 = vpack.c.b16 %v545, %v537
  %v682 = vpack.c.b16 %v546, %v538
  %v683 = vpack.c.b16 %v547, %v539
  %v684 = vpack.c.b16 %v548, %v540
  %v685 = vpack.c.b16 %v549, %v541
  %v686 = vpack.c.b16 %v550, %v542
  %v687 = vpack.c.b16 %v551, %v543
  %v688 = vpack.c.b16 %v560, %v552
  %v689 = vpack.c.b16 %v561, %v553
  %v690 = vpack.c.b16 %v562, %v554
  %v691 = vpack.c.b16 %v563, %v555
  %v692 = vpack.c.b16 %v564, %v556
  %v693 = vpack.c.b16 %v565, %v557
  %v694 = vpack.c.b16 %v566, %v558
  %v695 = vpack.c.b16 %v567, %v559
  %824 = vmatpush.bf16.msra.mxu0 %v624
  %825 = vmatpush.bf16.msra.mxu0 %v616
  %826 = vmatpush.bf16.msra.mxu0 %v608
  %827 = vmatpush.bf16.msra.mxu0 %v600
  %828 = vmatpush.bf16.msra.mxu0 %v592
  %829 = vmatpush.bf16.msra.mxu0 %v584
  %830 = vmatpush.bf16.msra.mxu0 %v576
  %831 = vmatpush.bf16.msra.mxu0 %v568
  %832 = vmatmul.bf16.gmra.mxu0 %v180
  %v833 = vpop.f32.mrf.mxu0
  %v834 = vadd.f32 %v158, %v833
  %v835 = vpop.f32.mrf.mxu0
  %v836 = vadd.f32 %v158, %v835
  %837 = vdwg.mxu0
  %838 = vmatpush.bf16.msra.mxu0 %v688
  %839 = vmatpush.bf16.msra.mxu0 %v680
  %840 = vmatpush.bf16.msra.mxu0 %v672
  %841 = vmatpush.bf16.msra.mxu0 %v664
  %842 = vmatpush.bf16.msra.mxu0 %v656
  %843 = vmatpush.bf16.msra.mxu0 %v648
  %844 = vmatpush.bf16.msra.mxu0 %v640
  %845 = vmatpush.bf16.msra.mxu0 %v632
  %846 = vmatmul.bf16.gmra.mxu0 %v181
  %v847 = vpop.f32.mrf.mxu0
  %v848 = vadd.f32 %v834, %v847
  %v849 = vpop.f32.mrf.mxu0
  %v850 = vadd.f32 %v836, %v849
  %851 = vdwg.mxu0
  %852 = vmatpush.bf16.msra.mxu0 %v625
  %853 = vmatpush.bf16.msra.mxu0 %v617
  %854 = vmatpush.bf16.msra.mxu0 %v609
  %855 = vmatpush.bf16.msra.mxu0 %v601
  %856 = vmatpush.bf16.msra.mxu0 %v593
  %857 = vmatpush.bf16.msra.mxu0 %v585
  %858 = vmatpush.bf16.msra.mxu0 %v577
  %859 = vmatpush.bf16.msra.mxu0 %v569
  %860 = vmatmul.bf16.gmra.mxu0 %v180
  %v861 = vpop.f32.mrf.mxu0
  %v862 = vadd.f32 %v159, %v861
  %v863 = vpop.f32.mrf.mxu0
  %v864 = vadd.f32 %v159, %v863
  %865 = vdwg.mxu0
  %866 = vmatpush.bf16.msra.mxu0 %v689
  %867 = vmatpush.bf16.msra.mxu0 %v681
  %868 = vmatpush.bf16.msra.mxu0 %v673
  %869 = vmatpush.bf16.msra.mxu0 %v665
  %870 = vmatpush.bf16.msra.mxu0 %v657
  %871 = vmatpush.bf16.msra.mxu0 %v649
  %872 = vmatpush.bf16.msra.mxu0 %v641
  %873 = vmatpush.bf16.msra.mxu0 %v633
  %874 = vmatmul.bf16.gmra.mxu0 %v181
  %v875 = vpop.f32.mrf.mxu0
  %v876 = vadd.f32 %v862, %v875
  %v877 = vpop.f32.mrf.mxu0
  %v878 = vadd.f32 %v864, %v877
  %879 = vdwg.mxu0
  %880 = vmatpush.bf16.msra.mxu0 %v626
  %881 = vmatpush.bf16.msra.mxu0 %v618
  %882 = vmatpush.bf16.msra.mxu0 %v610
  %883 = vmatpush.bf16.msra.mxu0 %v602
  %884 = vmatpush.bf16.msra.mxu0 %v594
  %885 = vmatpush.bf16.msra.mxu0 %v586
  %886 = vmatpush.bf16.msra.mxu0 %v578
  %887 = vmatpush.bf16.msra.mxu0 %v570
  %888 = vmatmul.bf16.gmra.mxu0 %v180
  %v889 = vpop.f32.mrf.mxu0
  %v890 = vadd.f32 %v160, %v889
  %v891 = vpop.f32.mrf.mxu0
  %v892 = vadd.f32 %v160, %v891
  %893 = vdwg.mxu0
  %894 = vmatpush.bf16.msra.mxu0 %v690
  %895 = vmatpush.bf16.msra.mxu0 %v682
  %896 = vmatpush.bf16.msra.mxu0 %v674
  %897 = vmatpush.bf16.msra.mxu0 %v666
  %898 = vmatpush.bf16.msra.mxu0 %v658
  %899 = vmatpush.bf16.msra.mxu0 %v650
  %900 = vmatpush.bf16.msra.mxu0 %v642
  %901 = vmatpush.bf16.msra.mxu0 %v634
  %902 = vmatmul.bf16.gmra.mxu0 %v181
  %v903 = vpop.f32.mrf.mxu0
  %v904 = vadd.f32 %v890, %v903
  %v905 = vpop.f32.mrf.mxu0
  %v906 = vadd.f32 %v892, %v905
  %907 = vdwg.mxu0
  %908 = vmatpush.bf16.msra.mxu0 %v627
  %909 = vmatpush.bf16.msra.mxu0 %v619
  %910 = vmatpush.bf16.msra.mxu0 %v611
  %911 = vmatpush.bf16.msra.mxu0 %v603
  %912 = vmatpush.bf16.msra.mxu0 %v595
  %913 = vmatpush.bf16.msra.mxu0 %v587
  %914 = vmatpush.bf16.msra.mxu0 %v579
  %915 = vmatpush.bf16.msra.mxu0 %v571
  %916 = vmatmul.bf16.gmra.mxu0 %v180
  %v917 = vpop.f32.mrf.mxu0
  %v918 = vadd.f32 %v161, %v917
  %v919 = vpop.f32.mrf.mxu0
  %v920 = vadd.f32 %v161, %v919
  %921 = vdwg.mxu0
  %922 = vmatpush.bf16.msra.mxu0 %v691
  %923 = vmatpush.bf16.msra.mxu0 %v683
  %924 = vmatpush.bf16.msra.mxu0 %v675
  %925 = vmatpush.bf16.msra.mxu0 %v667
  %926 = vmatpush.bf16.msra.mxu0 %v659
  %927 = vmatpush.bf16.msra.mxu0 %v651
  %928 = vmatpush.bf16.msra.mxu0 %v643
  %929 = vmatpush.bf16.msra.mxu0 %v635
  %930 = vmatmul.bf16.gmra.mxu0 %v181
  %v931 = vpop.f32.mrf.mxu0
  %v932 = vadd.f32 %v918, %v931
  %v933 = vpop.f32.mrf.mxu0
  %v934 = vadd.f32 %v920, %v933
  %935 = vdwg.mxu0
  %936 = vmatpush.bf16.msra.mxu0 %v628
  %937 = vmatpush.bf16.msra.mxu0 %v620
  %938 = vmatpush.bf16.msra.mxu0 %v612
  %939 = vmatpush.bf16.msra.mxu0 %v604
  %940 = vmatpush.bf16.msra.mxu0 %v596
  %941 = vmatpush.bf16.msra.mxu0 %v588
  %942 = vmatpush.bf16.msra.mxu0 %v580
  %943 = vmatpush.bf16.msra.mxu0 %v572
  %944 = vmatmul.bf16.gmra.mxu0 %v180
  %v945 = vpop.f32.mrf.mxu0
  %v946 = vadd.f32 %v162, %v945
  %v947 = vpop.f32.mrf.mxu0
  %v948 = vadd.f32 %v162, %v947
  %949 = vdwg.mxu0
  %950 = vmatpush.bf16.msra.mxu0 %v692
  %951 = vmatpush.bf16.msra.mxu0 %v684
  %952 = vmatpush.bf16.msra.mxu0 %v676
  %953 = vmatpush.bf16.msra.mxu0 %v668
  %954 = vmatpush.bf16.msra.mxu0 %v660
  %955 = vmatpush.bf16.msra.mxu0 %v652
  %956 = vmatpush.bf16.msra.mxu0 %v644
  %957 = vmatpush.bf16.msra.mxu0 %v636
  %958 = vmatmul.bf16.gmra.mxu0 %v181
  %v959 = vpop.f32.mrf.mxu0
  %v960 = vadd.f32 %v946, %v959
  %v961 = vpop.f32.mrf.mxu0
  %v962 = vadd.f32 %v948, %v961
  %963 = vdwg.mxu0
  %964 = vmatpush.bf16.msra.mxu0 %v629
  %965 = vmatpush.bf16.msra.mxu0 %v621
  %966 = vmatpush.bf16.msra.mxu0 %v613
  %967 = vmatpush.bf16.msra.mxu0 %v605
  %968 = vmatpush.bf16.msra.mxu0 %v597
  %969 = vmatpush.bf16.msra.mxu0 %v589
  %970 = vmatpush.bf16.msra.mxu0 %v581
  %971 = vmatpush.bf16.msra.mxu0 %v573
  %972 = vmatmul.bf16.gmra.mxu0 %v180
  %v973 = vpop.f32.mrf.mxu0
  %v974 = vadd.f32 %v163, %v973
  %v975 = vpop.f32.mrf.mxu0
  %v976 = vadd.f32 %v163, %v975
  %977 = vdwg.mxu0
  %978 = vmatpush.bf16.msra.mxu0 %v693
  %979 = vmatpush.bf16.msra.mxu0 %v685
  %980 = vmatpush.bf16.msra.mxu0 %v677
  %981 = vmatpush.bf16.msra.mxu0 %v669
  %982 = vmatpush.bf16.msra.mxu0 %v661
  %983 = vmatpush.bf16.msra.mxu0 %v653
  %984 = vmatpush.bf16.msra.mxu0 %v645
  %985 = vmatpush.bf16.msra.mxu0 %v637
  %986 = vmatmul.bf16.gmra.mxu0 %v181
  %v987 = vpop.f32.mrf.mxu0
  %v988 = vadd.f32 %v974, %v987
  %v989 = vpop.f32.mrf.mxu0
  %v990 = vadd.f32 %v976, %v989
  %991 = vdwg.mxu0
  %992 = vmatpush.bf16.msra.mxu0 %v630
  %993 = vmatpush.bf16.msra.mxu0 %v622
  %994 = vmatpush.bf16.msra.mxu0 %v614
  %995 = vmatpush.bf16.msra.mxu0 %v606
  %996 = vmatpush.bf16.msra.mxu0 %v598
  %997 = vmatpush.bf16.msra.mxu0 %v590
  %998 = vmatpush.bf16.msra.mxu0 %v582
  %999 = vmatpush.bf16.msra.mxu0 %v574
  %1000 = vmatmul.bf16.gmra.mxu0 %v180
  %v1001 = vpop.f32.mrf.mxu0
  %v1002 = vadd.f32 %v164, %v1001
  %v1003 = vpop.f32.mrf.mxu0
  %v1004 = vadd.f32 %v164, %v1003
  %1005 = vdwg.mxu0
  %1006 = vmatpush.bf16.msra.mxu0 %v694
  %1007 = vmatpush.bf16.msra.mxu0 %v686
  %1008 = vmatpush.bf16.msra.mxu0 %v678
  %1009 = vmatpush.bf16.msra.mxu0 %v670
  %1010 = vmatpush.bf16.msra.mxu0 %v662
  %1011 = vmatpush.bf16.msra.mxu0 %v654
  %1012 = vmatpush.bf16.msra.mxu0 %v646
  %1013 = vmatpush.bf16.msra.mxu0 %v638
  %1014 = vmatmul.bf16.gmra.mxu0 %v181
  %v1015 = vpop.f32.mrf.mxu0
  %v1016 = vadd.f32 %v1002, %v1015
  %v1017 = vpop.f32.mrf.mxu0
  %v1018 = vadd.f32 %v1004, %v1017
  %1019 = vdwg.mxu0
  %1020 = vmatpush.bf16.msra.mxu0 %v631
  %1021 = vmatpush.bf16.msra.mxu0 %v623
  %1022 = vmatpush.bf16.msra.mxu0 %v615
  %1023 = vmatpush.bf16.msra.mxu0 %v607
  %1024 = vmatpush.bf16.msra.mxu0 %v599
  %1025 = vmatpush.bf16.msra.mxu0 %v591
  %1026 = vmatpush.bf16.msra.mxu0 %v583
  %1027 = vmatpush.bf16.msra.mxu0 %v575
  %1028 = vmatmul.bf16.gmra.mxu0 %v180
  %v1029 = vpop.f32.mrf.mxu0
  %v1030 = vadd.f32 %v165, %v1029
  %v1031 = vpop.f32.mrf.mxu0
  %v1032 = vadd.f32 %v165, %v1031
  %1033 = vdwg.mxu0
  %1034 = vmatpush.bf16.msra.mxu0 %v695
  %1035 = vmatpush.bf16.msra.mxu0 %v687
  %1036 = vmatpush.bf16.msra.mxu0 %v679
  %1037 = vmatpush.bf16.msra.mxu0 %v671
  %1038 = vmatpush.bf16.msra.mxu0 %v663
  %1039 = vmatpush.bf16.msra.mxu0 %v655
  %1040 = vmatpush.bf16.msra.mxu0 %v647
  %1041 = vmatpush.bf16.msra.mxu0 %v639
  %1042 = vmatmul.bf16.gmra.mxu0 %v181
  %v1043 = vpop.f32.mrf.mxu0
  %v1044 = vadd.f32 %v1030, %v1043
  %v1045 = vpop.f32.mrf.mxu0
  %v1046 = vadd.f32 %v1032, %v1045
  %1047 = vdwg.mxu0
  %v1048 = vpack.c.bf16 %v850, %v848
  %v1049 = vpack.c.bf16 %v878, %v876
  %v1050 = vpack.c.bf16 %v906, %v904
  %v1051 = vpack.c.bf16 %v934, %v932
  %v1052 = vpack.c.bf16 %v962, %v960
  %v1053 = vpack.c.bf16 %v990, %v988
  %v1054 = vpack.c.bf16 %v1018, %v1016
  %v1055 = vpack.c.bf16 %v1046, %v1044
  %v1056 = vld [vmem:[%s3] sm:$0xff]
  %v1057 = vld [vmem:[%s3 + $0x8] sm:$0xff]
  %v1058 = vld [vmem:[%s3 + $0x10] sm:$0xff]
  %v1059 = vld [vmem:[%s3 + $0x18] sm:$0xff]
  %v1060 = vld [vmem:[%s3 + $0x20] sm:$0xff]
  %v1061 = vld [vmem:[%s3 + $0x28] sm:$0xff]
  %v1062 = vld [vmem:[%s3 + $0x30] sm:$0xff]
  %v1063 = vld [vmem:[%s3 + $0x38] sm:$0xff]
  %v1064 = vld [vmem:[%s3 + $0x40] sm:$0xff]
  %v1065 = vld [vmem:[%s3 + $0x48] sm:$0xff]
  %v1066 = vld [vmem:[%s3 + $0x50] sm:$0xff]
  %v1067 = vld [vmem:[%s3 + $0x58] sm:$0xff]
  %v1068 = vld [vmem:[%s3 + $0x60] sm:$0xff]
  %v1069 = vld [vmem:[%s3 + $0x68] sm:$0xff]
  %v1070 = vld [vmem:[%s3 + $0x70] sm:$0xff]
  %v1071 = vld [vmem:[%s3 + $0x78] sm:$0xff]
  %v1072 = vld [vmem:[%s3 + $0x80] sm:$0xff]
  %v1073 = vld [vmem:[%s3 + $0x88] sm:$0xff]
  %v1074 = vld [vmem:[%s3 + $0x90] sm:$0xff]
  %v1075 = vld [vmem:[%s3 + $0x98] sm:$0xff]
  %v1076 = vld [vmem:[%s3 + $0xa0] sm:$0xff]
  %v1077 = vld [vmem:[%s3 + $0xa8] sm:$0xff]
  %v1078 = vld [vmem:[%s3 + $0xb0] sm:$0xff]
  %v1079 = vld [vmem:[%s3 + $0xb8] sm:$0xff]
  %v1080 = vld [vmem:[%s3 + $0xc0] sm:$0xff]
  %v1081 = vld [vmem:[%s3 + $0xc8] sm:$0xff]
  %v1082 = vld [vmem:[%s3 + $0xd0] sm:$0xff]
  %v1083 = vld [vmem:[%s3 + $0xd8] sm:$0xff]
  %v1084 = vld [vmem:[%s3 + $0xe0] sm:$0xff]
  %v1085 = vld [vmem:[%s3 + $0xe8] sm:$0xff]
  %v1086 = vld [vmem:[%s3 + $0xf0] sm:$0xff]
  %v1087 = vld [vmem:[%s3 + $0xf8] sm:$0xff]
  %v1088 = vld [vmem:[%s3 + $0x100] sm:$0xff]
  %v1089 = vld [vmem:[%s3 + $0x108] sm:$0xff]
  %v1090 = vld [vmem:[%s3 + $0x110] sm:$0xff]
  %v1091 = vld [vmem:[%s3 + $0x118] sm:$0xff]
  %v1092 = vld [vmem:[%s3 + $0x120] sm:$0xff]
  %v1093 = vld [vmem:[%s3 + $0x128] sm:$0xff]
  %v1094 = vld [vmem:[%s3 + $0x130] sm:$0xff]
  %v1095 = vld [vmem:[%s3 + $0x138] sm:$0xff]
  %v1096 = vld [vmem:[%s3 + $0x140] sm:$0xff]
  %v1097 = vld [vmem:[%s3 + $0x148] sm:$0xff]
  %v1098 = vld [vmem:[%s3 + $0x150] sm:$0xff]
  %v1099 = vld [vmem:[%s3 + $0x158] sm:$0xff]
  %v1100 = vld [vmem:[%s3 + $0x160] sm:$0xff]
  %v1101 = vld [vmem:[%s3 + $0x168] sm:$0xff]
  %v1102 = vld [vmem:[%s3 + $0x170] sm:$0xff]
  %v1103 = vld [vmem:[%s3 + $0x178] sm:$0xff]
  %v1104 = vld [vmem:[%s3 + $0x180] sm:$0xff]
  %v1105 = vld [vmem:[%s3 + $0x188] sm:$0xff]
  %v1106 = vld [vmem:[%s3 + $0x190] sm:$0xff]
  %v1107 = vld [vmem:[%s3 + $0x198] sm:$0xff]
  %v1108 = vld [vmem:[%s3 + $0x1a0] sm:$0xff]
  %v1109 = vld [vmem:[%s3 + $0x1a8] sm:$0xff]
  %v1110 = vld [vmem:[%s3 + $0x1b0] sm:$0xff]
  %v1111 = vld [vmem:[%s3 + $0x1b8] sm:$0xff]
  %v1112 = vld [vmem:[%s3 + $0x1c0] sm:$0xff]
  %v1113 = vld [vmem:[%s3 + $0x1c8] sm:$0xff]
  %v1114 = vld [vmem:[%s3 + $0x1d0] sm:$0xff]
  %v1115 = vld [vmem:[%s3 + $0x1d8] sm:$0xff]
  %v1116 = vld [vmem:[%s3 + $0x1e0] sm:$0xff]
  %v1117 = vld [vmem:[%s3 + $0x1e8] sm:$0xff]
  %v1118 = vld [vmem:[%s3 + $0x1f0] sm:$0xff]
  %v1119 = vld [vmem:[%s3 + $0x1f8] sm:$0xff]
  %v1120 = vld [vmem:[%s3 + $0x200] sm:$0xff]
  %v1121 = vld [vmem:[%s3 + $0x208] sm:$0xff]
  %v1122 = vld [vmem:[%s3 + $0x210] sm:$0xff]
  %v1123 = vld [vmem:[%s3 + $0x218] sm:$0xff]
  %v1124 = vld [vmem:[%s3 + $0x220] sm:$0xff]
  %v1125 = vld [vmem:[%s3 + $0x228] sm:$0xff]
  %v1126 = vld [vmem:[%s3 + $0x230] sm:$0xff]
  %v1127 = vld [vmem:[%s3 + $0x238] sm:$0xff]
  %v1128 = vld [vmem:[%s3 + $0x240] sm:$0xff]
  %v1129 = vld [vmem:[%s3 + $0x248] sm:$0xff]
  %v1130 = vld [vmem:[%s3 + $0x250] sm:$0xff]
  %v1131 = vld [vmem:[%s3 + $0x258] sm:$0xff]
  %v1132 = vld [vmem:[%s3 + $0x260] sm:$0xff]
  %v1133 = vld [vmem:[%s3 + $0x268] sm:$0xff]
  %v1134 = vld [vmem:[%s3 + $0x270] sm:$0xff]
  %v1135 = vld [vmem:[%s3 + $0x278] sm:$0xff]
  %v1136 = vld [vmem:[%s3 + $0x280] sm:$0xff]
  %v1137 = vld [vmem:[%s3 + $0x288] sm:$0xff]
  %v1138 = vld [vmem:[%s3 + $0x290] sm:$0xff]
  %v1139 = vld [vmem:[%s3 + $0x298] sm:$0xff]
  %v1140 = vld [vmem:[%s3 + $0x2a0] sm:$0xff]
  %v1141 = vld [vmem:[%s3 + $0x2a8] sm:$0xff]
  %v1142 = vld [vmem:[%s3 + $0x2b0] sm:$0xff]
  %v1143 = vld [vmem:[%s3 + $0x2b8] sm:$0xff]
  %v1144 = vld [vmem:[%s3 + $0x2c0] sm:$0xff]
  %v1145 = vld [vmem:[%s3 + $0x2c8] sm:$0xff]
  %v1146 = vld [vmem:[%s3 + $0x2d0] sm:$0xff]
  %v1147 = vld [vmem:[%s3 + $0x2d8] sm:$0xff]
  %v1148 = vld [vmem:[%s3 + $0x2e0] sm:$0xff]
  %v1149 = vld [vmem:[%s3 + $0x2e8] sm:$0xff]
  %v1150 = vld [vmem:[%s3 + $0x2f0] sm:$0xff]
  %v1151 = vld [vmem:[%s3 + $0x2f8] sm:$0xff]
  %v1152 = vld [vmem:[%s3 + $0x300] sm:$0xff]
  %v1153 = vld [vmem:[%s3 + $0x308] sm:$0xff]
  %v1154 = vld [vmem:[%s3 + $0x310] sm:$0xff]
  %v1155 = vld [vmem:[%s3 + $0x318] sm:$0xff]
  %v1156 = vld [vmem:[%s3 + $0x320] sm:$0xff]
  %v1157 = vld [vmem:[%s3 + $0x328] sm:$0xff]
  %v1158 = vld [vmem:[%s3 + $0x330] sm:$0xff]
  %v1159 = vld [vmem:[%s3 + $0x338] sm:$0xff]
  %v1160 = vld [vmem:[%s3 + $0x340] sm:$0xff]
  %v1161 = vld [vmem:[%s3 + $0x348] sm:$0xff]
  %v1162 = vld [vmem:[%s3 + $0x350] sm:$0xff]
  %v1163 = vld [vmem:[%s3 + $0x358] sm:$0xff]
  %v1164 = vld [vmem:[%s3 + $0x360] sm:$0xff]
  %v1165 = vld [vmem:[%s3 + $0x368] sm:$0xff]
  %v1166 = vld [vmem:[%s3 + $0x370] sm:$0xff]
  %v1167 = vld [vmem:[%s3 + $0x378] sm:$0xff]
  %v1168 = vld [vmem:[%s3 + $0x380] sm:$0xff]
  %v1169 = vld [vmem:[%s3 + $0x388] sm:$0xff]
  %v1170 = vld [vmem:[%s3 + $0x390] sm:$0xff]
  %v1171 = vld [vmem:[%s3 + $0x398] sm:$0xff]
  %v1172 = vld [vmem:[%s3 + $0x3a0] sm:$0xff]
  %v1173 = vld [vmem:[%s3 + $0x3a8] sm:$0xff]
  %v1174 = vld [vmem:[%s3 + $0x3b0] sm:$0xff]
  %v1175 = vld [vmem:[%s3 + $0x3b8] sm:$0xff]
  %v1176 = vld [vmem:[%s3 + $0x3c0] sm:$0xff]
  %v1177 = vld [vmem:[%s3 + $0x3c8] sm:$0xff]
  %v1178 = vld [vmem:[%s3 + $0x3d0] sm:$0xff]
  %v1179 = vld [vmem:[%s3 + $0x3d8] sm:$0xff]
  %v1180 = vld [vmem:[%s3 + $0x3e0] sm:$0xff]
  %v1181 = vld [vmem:[%s3 + $0x3e8] sm:$0xff]
  %v1182 = vld [vmem:[%s3 + $0x3f0] sm:$0xff]
  %v1183 = vld [vmem:[%s3 + $0x3f8] sm:$0xff]
  %v1184 = vld [vmem:[%s3 + $0x400] sm:$0xff]
  %v1185 = vld [vmem:[%s3 + $0x408] sm:$0xff]
  %v1186 = vld [vmem:[%s3 + $0x410] sm:$0xff]
  %v1187 = vld [vmem:[%s3 + $0x418] sm:$0xff]
  %v1188 = vld [vmem:[%s3 + $0x420] sm:$0xff]
  %v1189 = vld [vmem:[%s3 + $0x428] sm:$0xff]
  %v1190 = vld [vmem:[%s3 + $0x430] sm:$0xff]
  %v1191 = vld [vmem:[%s3 + $0x438] sm:$0xff]
  %v1192 = vld [vmem:[%s3 + $0x440] sm:$0xff]
  %v1193 = vld [vmem:[%s3 + $0x448] sm:$0xff]
  %v1194 = vld [vmem:[%s3 + $0x450] sm:$0xff]
  %v1195 = vld [vmem:[%s3 + $0x458] sm:$0xff]
  %v1196 = vld [vmem:[%s3 + $0x460] sm:$0xff]
  %v1197 = vld [vmem:[%s3 + $0x468] sm:$0xff]
  %v1198 = vld [vmem:[%s3 + $0x470] sm:$0xff]
  %v1199 = vld [vmem:[%s3 + $0x478] sm:$0xff]
  %v1200 = vld [vmem:[%s3 + $0x480] sm:$0xff]
  %v1201 = vld [vmem:[%s3 + $0x488] sm:$0xff]
  %v1202 = vld [vmem:[%s3 + $0x490] sm:$0xff]
  %v1203 = vld [vmem:[%s3 + $0x498] sm:$0xff]
  %v1204 = vld [vmem:[%s3 + $0x4a0] sm:$0xff]
  %v1205 = vld [vmem:[%s3 + $0x4a8] sm:$0xff]
  %v1206 = vld [vmem:[%s3 + $0x4b0] sm:$0xff]
  %v1207 = vld [vmem:[%s3 + $0x4b8] sm:$0xff]
  %v1208 = vld [vmem:[%s3 + $0x4c0] sm:$0xff]
  %v1209 = vld [vmem:[%s3 + $0x4c8] sm:$0xff]
  %v1210 = vld [vmem:[%s3 + $0x4d0] sm:$0xff]
  %v1211 = vld [vmem:[%s3 + $0x4d8] sm:$0xff]
  %v1212 = vld [vmem:[%s3 + $0x4e0] sm:$0xff]
  %v1213 = vld [vmem:[%s3 + $0x4e8] sm:$0xff]
  %v1214 = vld [vmem:[%s3 + $0x4f0] sm:$0xff]
  %v1215 = vld [vmem:[%s3 + $0x4f8] sm:$0xff]
  %v1216 = vld [vmem:[%s3 + $0x500] sm:$0xff]
  %v1217 = vld [vmem:[%s3 + $0x508] sm:$0xff]
  %v1218 = vld [vmem:[%s3 + $0x510] sm:$0xff]
  %v1219 = vld [vmem:[%s3 + $0x518] sm:$0xff]
  %v1220 = vld [vmem:[%s3 + $0x520] sm:$0xff]
  %v1221 = vld [vmem:[%s3 + $0x528] sm:$0xff]
  %v1222 = vld [vmem:[%s3 + $0x530] sm:$0xff]
  %v1223 = vld [vmem:[%s3 + $0x538] sm:$0xff]
  %v1224 = vld [vmem:[%s3 + $0x540] sm:$0xff]
  %v1225 = vld [vmem:[%s3 + $0x548] sm:$0xff]
  %v1226 = vld [vmem:[%s3 + $0x550] sm:$0xff]
  %v1227 = vld [vmem:[%s3 + $0x558] sm:$0xff]
  %v1228 = vld [vmem:[%s3 + $0x560] sm:$0xff]
  %v1229 = vld [vmem:[%s3 + $0x568] sm:$0xff]
  %v1230 = vld [vmem:[%s3 + $0x570] sm:$0xff]
  %v1231 = vld [vmem:[%s3 + $0x578] sm:$0xff]
  %v1232 = vld [vmem:[%s3 + $0x580] sm:$0xff]
  %v1233 = vld [vmem:[%s3 + $0x588] sm:$0xff]
  %v1234 = vld [vmem:[%s3 + $0x590] sm:$0xff]
  %v1235 = vld [vmem:[%s3 + $0x598] sm:$0xff]
  %v1236 = vld [vmem:[%s3 + $0x5a0] sm:$0xff]
  %v1237 = vld [vmem:[%s3 + $0x5a8] sm:$0xff]
  %v1238 = vld [vmem:[%s3 + $0x5b0] sm:$0xff]
  %v1239 = vld [vmem:[%s3 + $0x5b8] sm:$0xff]
  %v1240 = vld [vmem:[%s3 + $0x5c0] sm:$0xff]
  %v1241 = vld [vmem:[%s3 + $0x5c8] sm:$0xff]
  %v1242 = vld [vmem:[%s3 + $0x5d0] sm:$0xff]
  %v1243 = vld [vmem:[%s3 + $0x5d8] sm:$0xff]
  %v1244 = vld [vmem:[%s3 + $0x5e0] sm:$0xff]
  %v1245 = vld [vmem:[%s3 + $0x5e8] sm:$0xff]
  %v1246 = vld [vmem:[%s3 + $0x5f0] sm:$0xff]
  %v1247 = vld [vmem:[%s3 + $0x5f8] sm:$0xff]
  %v1248 = vld [vmem:[%s3 + $0x600] sm:$0xff]
  %v1249 = vld [vmem:[%s3 + $0x608] sm:$0xff]
  %v1250 = vld [vmem:[%s3 + $0x610] sm:$0xff]
  %v1251 = vld [vmem:[%s3 + $0x618] sm:$0xff]
  %v1252 = vld [vmem:[%s3 + $0x620] sm:$0xff]
  %v1253 = vld [vmem:[%s3 + $0x628] sm:$0xff]
  %v1254 = vld [vmem:[%s3 + $0x630] sm:$0xff]
  %v1255 = vld [vmem:[%s3 + $0x638] sm:$0xff]
  %v1256 = vld [vmem:[%s3 + $0x640] sm:$0xff]
  %v1257 = vld [vmem:[%s3 + $0x648] sm:$0xff]
  %v1258 = vld [vmem:[%s3 + $0x650] sm:$0xff]
  %v1259 = vld [vmem:[%s3 + $0x658] sm:$0xff]
  %v1260 = vld [vmem:[%s3 + $0x660] sm:$0xff]
  %v1261 = vld [vmem:[%s3 + $0x668] sm:$0xff]
  %v1262 = vld [vmem:[%s3 + $0x670] sm:$0xff]
  %v1263 = vld [vmem:[%s3 + $0x678] sm:$0xff]
  %v1264 = vld [vmem:[%s3 + $0x680] sm:$0xff]
  %v1265 = vld [vmem:[%s3 + $0x688] sm:$0xff]
  %v1266 = vld [vmem:[%s3 + $0x690] sm:$0xff]
  %v1267 = vld [vmem:[%s3 + $0x698] sm:$0xff]
  %v1268 = vld [vmem:[%s3 + $0x6a0] sm:$0xff]
  %v1269 = vld [vmem:[%s3 + $0x6a8] sm:$0xff]
  %v1270 = vld [vmem:[%s3 + $0x6b0] sm:$0xff]
  %v1271 = vld [vmem:[%s3 + $0x6b8] sm:$0xff]
  %v1272 = vld [vmem:[%s3 + $0x6c0] sm:$0xff]
  %v1273 = vld [vmem:[%s3 + $0x6c8] sm:$0xff]
  %v1274 = vld [vmem:[%s3 + $0x6d0] sm:$0xff]
  %v1275 = vld [vmem:[%s3 + $0x6d8] sm:$0xff]
  %v1276 = vld [vmem:[%s3 + $0x6e0] sm:$0xff]
  %v1277 = vld [vmem:[%s3 + $0x6e8] sm:$0xff]
  %v1278 = vld [vmem:[%s3 + $0x6f0] sm:$0xff]
  %v1279 = vld [vmem:[%s3 + $0x6f8] sm:$0xff]
  %v1280 = vld [vmem:[%s3 + $0x700] sm:$0xff]
  %v1281 = vld [vmem:[%s3 + $0x708] sm:$0xff]
  %v1282 = vld [vmem:[%s3 + $0x710] sm:$0xff]
  %v1283 = vld [vmem:[%s3 + $0x718] sm:$0xff]
  %v1284 = vld [vmem:[%s3 + $0x720] sm:$0xff]
  %v1285 = vld [vmem:[%s3 + $0x728] sm:$0xff]
  %v1286 = vld [vmem:[%s3 + $0x730] sm:$0xff]
  %v1287 = vld [vmem:[%s3 + $0x738] sm:$0xff]
  %v1288 = vld [vmem:[%s3 + $0x740] sm:$0xff]
  %v1289 = vld [vmem:[%s3 + $0x748] sm:$0xff]
  %v1290 = vld [vmem:[%s3 + $0x750] sm:$0xff]
  %v1291 = vld [vmem:[%s3 + $0x758] sm:$0xff]
  %v1292 = vld [vmem:[%s3 + $0x760] sm:$0xff]
  %v1293 = vld [vmem:[%s3 + $0x768] sm:$0xff]
  %v1294 = vld [vmem:[%s3 + $0x770] sm:$0xff]
  %v1295 = vld [vmem:[%s3 + $0x778] sm:$0xff]
  %v1296 = vld [vmem:[%s3 + $0x780] sm:$0xff]
  %v1297 = vld [vmem:[%s3 + $0x788] sm:$0xff]
  %v1298 = vld [vmem:[%s3 + $0x790] sm:$0xff]
  %v1299 = vld [vmem:[%s3 + $0x798] sm:$0xff]
  %v1300 = vld [vmem:[%s3 + $0x7a0] sm:$0xff]
  %v1301 = vld [vmem:[%s3 + $0x7a8] sm:$0xff]
  %v1302 = vld [vmem:[%s3 + $0x7b0] sm:$0xff]
  %v1303 = vld [vmem:[%s3 + $0x7b8] sm:$0xff]
  %v1304 = vld [vmem:[%s3 + $0x7c0] sm:$0xff]
  %v1305 = vld [vmem:[%s3 + $0x7c8] sm:$0xff]
  %v1306 = vld [vmem:[%s3 + $0x7d0] sm:$0xff]
  %v1307 = vld [vmem:[%s3 + $0x7d8] sm:$0xff]
  %v1308 = vld [vmem:[%s3 + $0x7e0] sm:$0xff]
  %v1309 = vld [vmem:[%s3 + $0x7e8] sm:$0xff]
  %v1310 = vld [vmem:[%s3 + $0x7f0] sm:$0xff]
  %v1311 = vld [vmem:[%s3 + $0x7f8] sm:$0xff]
  %v1312 = vld [vmem:[%s4] sm:$0xf]
  %v1314 = vperm.slane %v1312, 0
  %v1315 = vperm.slane %v1312, 1
  %v1316 = vperm.slane %v1312, 2
  %v1317 = vperm.slane %v1312, 3
  %v1578 = vunpack.c.l.b16 %v1056
  %v1579 = vunpack.c.h.b16 %v1056
  %v1580 = vunpack.c.l.b16 %v1057
  %v1581 = vunpack.c.h.b16 %v1057
  %v1582 = vunpack.c.l.b16 %v1058
  %v1583 = vunpack.c.h.b16 %v1058
  %v1584 = vunpack.c.l.b16 %v1059
  %v1585 = vunpack.c.h.b16 %v1059
  %v1586 = vunpack.c.l.b16 %v1060
  %v1587 = vunpack.c.h.b16 %v1060
  %v1588 = vunpack.c.l.b16 %v1061
  %v1589 = vunpack.c.h.b16 %v1061
  %v1590 = vunpack.c.l.b16 %v1062
  %v1591 = vunpack.c.h.b16 %v1062
  %v1592 = vunpack.c.l.b16 %v1063
  %v1593 = vunpack.c.h.b16 %v1063
  %v1594 = vunpack.c.l.b16 %v1064
  %v1595 = vunpack.c.h.b16 %v1064
  %v1596 = vunpack.c.l.b16 %v1065
  %v1597 = vunpack.c.h.b16 %v1065
  %v1598 = vunpack.c.l.b16 %v1066
  %v1599 = vunpack.c.h.b16 %v1066
  %v1600 = vunpack.c.l.b16 %v1067
  %v1601 = vunpack.c.h.b16 %v1067
  %v1602 = vunpack.c.l.b16 %v1068
  %v1603 = vunpack.c.h.b16 %v1068
  %v1604 = vunpack.c.l.b16 %v1069
  %v1605 = vunpack.c.h.b16 %v1069
  %v1606 = vunpack.c.l.b16 %v1070
  %v1607 = vunpack.c.h.b16 %v1070
  %v1608 = vunpack.c.l.b16 %v1071
  %v1609 = vunpack.c.h.b16 %v1071
  %v1610 = vunpack.c.l.b16 %v1072
  %v1611 = vunpack.c.h.b16 %v1072
  %v1612 = vunpack.c.l.b16 %v1073
  %v1613 = vunpack.c.h.b16 %v1073
  %v1614 = vunpack.c.l.b16 %v1074
  %v1615 = vunpack.c.h.b16 %v1074
  %v1616 = vunpack.c.l.b16 %v1075
  %v1617 = vunpack.c.h.b16 %v1075
  %v1618 = vunpack.c.l.b16 %v1076
  %v1619 = vunpack.c.h.b16 %v1076
  %v1620 = vunpack.c.l.b16 %v1077
  %v1621 = vunpack.c.h.b16 %v1077
  %v1622 = vunpack.c.l.b16 %v1078
  %v1623 = vunpack.c.h.b16 %v1078
  %v1624 = vunpack.c.l.b16 %v1079
  %v1625 = vunpack.c.h.b16 %v1079
  %v1626 = vunpack.c.l.b16 %v1080
  %v1627 = vunpack.c.h.b16 %v1080
  %v1628 = vunpack.c.l.b16 %v1081
  %v1629 = vunpack.c.h.b16 %v1081
  %v1630 = vunpack.c.l.b16 %v1082
  %v1631 = vunpack.c.h.b16 %v1082
  %v1632 = vunpack.c.l.b16 %v1083
  %v1633 = vunpack.c.h.b16 %v1083
  %v1634 = vunpack.c.l.b16 %v1084
  %v1635 = vunpack.c.h.b16 %v1084
  %v1636 = vunpack.c.l.b16 %v1085
  %v1637 = vunpack.c.h.b16 %v1085
  %v1638 = vunpack.c.l.b16 %v1086
  %v1639 = vunpack.c.h.b16 %v1086
  %v1640 = vunpack.c.l.b16 %v1087
  %v1641 = vunpack.c.h.b16 %v1087
  %v1642 = vunpack.c.l.b16 %v1088
  %v1643 = vunpack.c.h.b16 %v1088
  %v1644 = vunpack.c.l.b16 %v1089
  %v1645 = vunpack.c.h.b16 %v1089
  %v1646 = vunpack.c.l.b16 %v1090
  %v1647 = vunpack.c.h.b16 %v1090
  %v1648 = vunpack.c.l.b16 %v1091
  %v1649 = vunpack.c.h.b16 %v1091
  %v1650 = vunpack.c.l.b16 %v1092
  %v1651 = vunpack.c.h.b16 %v1092
  %v1652 = vunpack.c.l.b16 %v1093
  %v1653 = vunpack.c.h.b16 %v1093
  %v1654 = vunpack.c.l.b16 %v1094
  %v1655 = vunpack.c.h.b16 %v1094
  %v1656 = vunpack.c.l.b16 %v1095
  %v1657 = vunpack.c.h.b16 %v1095
  %v1658 = vunpack.c.l.b16 %v1096
  %v1659 = vunpack.c.h.b16 %v1096
  %v1660 = vunpack.c.l.b16 %v1097
  %v1661 = vunpack.c.h.b16 %v1097
  %v1662 = vunpack.c.l.b16 %v1098
  %v1663 = vunpack.c.h.b16 %v1098
  %v1664 = vunpack.c.l.b16 %v1099
  %v1665 = vunpack.c.h.b16 %v1099
  %v1666 = vunpack.c.l.b16 %v1100
  %v1667 = vunpack.c.h.b16 %v1100
  %v1668 = vunpack.c.l.b16 %v1101
  %v1669 = vunpack.c.h.b16 %v1101
  %v1670 = vunpack.c.l.b16 %v1102
  %v1671 = vunpack.c.h.b16 %v1102
  %v1672 = vunpack.c.l.b16 %v1103
  %v1673 = vunpack.c.h.b16 %v1103
  %v1674 = vunpack.c.l.b16 %v1104
  %v1675 = vunpack.c.h.b16 %v1104
  %v1676 = vunpack.c.l.b16 %v1105
  %v1677 = vunpack.c.h.b16 %v1105
  %v1678 = vunpack.c.l.b16 %v1106
  %v1679 = vunpack.c.h.b16 %v1106
  %v1680 = vunpack.c.l.b16 %v1107
  %v1681 = vunpack.c.h.b16 %v1107
  %v1682 = vunpack.c.l.b16 %v1108
  %v1683 = vunpack.c.h.b16 %v1108
  %v1684 = vunpack.c.l.b16 %v1109
  %v1685 = vunpack.c.h.b16 %v1109
  %v1686 = vunpack.c.l.b16 %v1110
  %v1687 = vunpack.c.h.b16 %v1110
  %v1688 = vunpack.c.l.b16 %v1111
  %v1689 = vunpack.c.h.b16 %v1111
  %v1690 = vunpack.c.l.b16 %v1112
  %v1691 = vunpack.c.h.b16 %v1112
  %v1692 = vunpack.c.l.b16 %v1113
  %v1693 = vunpack.c.h.b16 %v1113
  %v1694 = vunpack.c.l.b16 %v1114
  %v1695 = vunpack.c.h.b16 %v1114
  %v1696 = vunpack.c.l.b16 %v1115
  %v1697 = vunpack.c.h.b16 %v1115
  %v1698 = vunpack.c.l.b16 %v1116
  %v1699 = vunpack.c.h.b16 %v1116
  %v1700 = vunpack.c.l.b16 %v1117
  %v1701 = vunpack.c.h.b16 %v1117
  %v1702 = vunpack.c.l.b16 %v1118
  %v1703 = vunpack.c.h.b16 %v1118
  %v1704 = vunpack.c.l.b16 %v1119
  %v1705 = vunpack.c.h.b16 %v1119
  %v1706 = vunpack.c.l.b16 %v1120
  %v1707 = vunpack.c.h.b16 %v1120
  %v1708 = vunpack.c.l.b16 %v1121
  %v1709 = vunpack.c.h.b16 %v1121
  %v1710 = vunpack.c.l.b16 %v1122
  %v1711 = vunpack.c.h.b16 %v1122
  %v1712 = vunpack.c.l.b16 %v1123
  %v1713 = vunpack.c.h.b16 %v1123
  %v1714 = vunpack.c.l.b16 %v1124
  %v1715 = vunpack.c.h.b16 %v1124
  %v1716 = vunpack.c.l.b16 %v1125
  %v1717 = vunpack.c.h.b16 %v1125
  %v1718 = vunpack.c.l.b16 %v1126
  %v1719 = vunpack.c.h.b16 %v1126
  %v1720 = vunpack.c.l.b16 %v1127
  %v1721 = vunpack.c.h.b16 %v1127
  %v1722 = vunpack.c.l.b16 %v1128
  %v1723 = vunpack.c.h.b16 %v1128
  %v1724 = vunpack.c.l.b16 %v1129
  %v1725 = vunpack.c.h.b16 %v1129
  %v1726 = vunpack.c.l.b16 %v1130
  %v1727 = vunpack.c.h.b16 %v1130
  %v1728 = vunpack.c.l.b16 %v1131
  %v1729 = vunpack.c.h.b16 %v1131
  %v1730 = vunpack.c.l.b16 %v1132
  %v1731 = vunpack.c.h.b16 %v1132
  %v1732 = vunpack.c.l.b16 %v1133
  %v1733 = vunpack.c.h.b16 %v1133
  %v1734 = vunpack.c.l.b16 %v1134
  %v1735 = vunpack.c.h.b16 %v1134
  %v1736 = vunpack.c.l.b16 %v1135
  %v1737 = vunpack.c.h.b16 %v1135
  %v1738 = vunpack.c.l.b16 %v1136
  %v1739 = vunpack.c.h.b16 %v1136
  %v1740 = vunpack.c.l.b16 %v1137
  %v1741 = vunpack.c.h.b16 %v1137
  %v1742 = vunpack.c.l.b16 %v1138
  %v1743 = vunpack.c.h.b16 %v1138
  %v1744 = vunpack.c.l.b16 %v1139
  %v1745 = vunpack.c.h.b16 %v1139
  %v1746 = vunpack.c.l.b16 %v1140
  %v1747 = vunpack.c.h.b16 %v1140
  %v1748 = vunpack.c.l.b16 %v1141
  %v1749 = vunpack.c.h.b16 %v1141
  %v1750 = vunpack.c.l.b16 %v1142
  %v1751 = vunpack.c.h.b16 %v1142
  %v1752 = vunpack.c.l.b16 %v1143
  %v1753 = vunpack.c.h.b16 %v1143
  %v1754 = vunpack.c.l.b16 %v1144
  %v1755 = vunpack.c.h.b16 %v1144
  %v1756 = vunpack.c.l.b16 %v1145
  %v1757 = vunpack.c.h.b16 %v1145
  %v1758 = vunpack.c.l.b16 %v1146
  %v1759 = vunpack.c.h.b16 %v1146
  %v1760 = vunpack.c.l.b16 %v1147
  %v1761 = vunpack.c.h.b16 %v1147
  %v1762 = vunpack.c.l.b16 %v1148
  %v1763 = vunpack.c.h.b16 %v1148
  %v1764 = vunpack.c.l.b16 %v1149
  %v1765 = vunpack.c.h.b16 %v1149
  %v1766 = vunpack.c.l.b16 %v1150
  %v1767 = vunpack.c.h.b16 %v1150
  %v1768 = vunpack.c.l.b16 %v1151
  %v1769 = vunpack.c.h.b16 %v1151
  %v1770 = vunpack.c.l.b16 %v1152
  %v1771 = vunpack.c.h.b16 %v1152
  %v1772 = vunpack.c.l.b16 %v1153
  %v1773 = vunpack.c.h.b16 %v1153
  %v1774 = vunpack.c.l.b16 %v1154
  %v1775 = vunpack.c.h.b16 %v1154
  %v1776 = vunpack.c.l.b16 %v1155
  %v1777 = vunpack.c.h.b16 %v1155
  %v1778 = vunpack.c.l.b16 %v1156
  %v1779 = vunpack.c.h.b16 %v1156
  %v1780 = vunpack.c.l.b16 %v1157
  %v1781 = vunpack.c.h.b16 %v1157
  %v1782 = vunpack.c.l.b16 %v1158
  %v1783 = vunpack.c.h.b16 %v1158
  %v1784 = vunpack.c.l.b16 %v1159
  %v1785 = vunpack.c.h.b16 %v1159
  %v1786 = vunpack.c.l.b16 %v1160
  %v1787 = vunpack.c.h.b16 %v1160
  %v1788 = vunpack.c.l.b16 %v1161
  %v1789 = vunpack.c.h.b16 %v1161
  %v1790 = vunpack.c.l.b16 %v1162
  %v1791 = vunpack.c.h.b16 %v1162
  %v1792 = vunpack.c.l.b16 %v1163
  %v1793 = vunpack.c.h.b16 %v1163
  %v1794 = vunpack.c.l.b16 %v1164
  %v1795 = vunpack.c.h.b16 %v1164
  %v1796 = vunpack.c.l.b16 %v1165
  %v1797 = vunpack.c.h.b16 %v1165
  %v1798 = vunpack.c.l.b16 %v1166
  %v1799 = vunpack.c.h.b16 %v1166
  %v1800 = vunpack.c.l.b16 %v1167
  %v1801 = vunpack.c.h.b16 %v1167
  %v1802 = vunpack.c.l.b16 %v1168
  %v1803 = vunpack.c.h.b16 %v1168
  %v1804 = vunpack.c.l.b16 %v1169
  %v1805 = vunpack.c.h.b16 %v1169
  %v1806 = vunpack.c.l.b16 %v1170
  %v1807 = vunpack.c.h.b16 %v1170
  %v1808 = vunpack.c.l.b16 %v1171
  %v1809 = vunpack.c.h.b16 %v1171
  %v1810 = vunpack.c.l.b16 %v1172
  %v1811 = vunpack.c.h.b16 %v1172
  %v1812 = vunpack.c.l.b16 %v1173
  %v1813 = vunpack.c.h.b16 %v1173
  %v1814 = vunpack.c.l.b16 %v1174
  %v1815 = vunpack.c.h.b16 %v1174
  %v1816 = vunpack.c.l.b16 %v1175
  %v1817 = vunpack.c.h.b16 %v1175
  %v1818 = vunpack.c.l.b16 %v1176
  %v1819 = vunpack.c.h.b16 %v1176
  %v1820 = vunpack.c.l.b16 %v1177
  %v1821 = vunpack.c.h.b16 %v1177
  %v1822 = vunpack.c.l.b16 %v1178
  %v1823 = vunpack.c.h.b16 %v1178
  %v1824 = vunpack.c.l.b16 %v1179
  %v1825 = vunpack.c.h.b16 %v1179
  %v1826 = vunpack.c.l.b16 %v1180
  %v1827 = vunpack.c.h.b16 %v1180
  %v1828 = vunpack.c.l.b16 %v1181
  %v1829 = vunpack.c.h.b16 %v1181
  %v1830 = vunpack.c.l.b16 %v1182
  %v1831 = vunpack.c.h.b16 %v1182
  %v1832 = vunpack.c.l.b16 %v1183
  %v1833 = vunpack.c.h.b16 %v1183
  %v1834 = vunpack.c.l.b16 %v1184
  %v1835 = vunpack.c.h.b16 %v1184
  %v1836 = vunpack.c.l.b16 %v1185
  %v1837 = vunpack.c.h.b16 %v1185
  %v1838 = vunpack.c.l.b16 %v1186
  %v1839 = vunpack.c.h.b16 %v1186
  %v1840 = vunpack.c.l.b16 %v1187
  %v1841 = vunpack.c.h.b16 %v1187
  %v1842 = vunpack.c.l.b16 %v1188
  %v1843 = vunpack.c.h.b16 %v1188
  %v1844 = vunpack.c.l.b16 %v1189
  %v1845 = vunpack.c.h.b16 %v1189
  %v1846 = vunpack.c.l.b16 %v1190
  %v1847 = vunpack.c.h.b16 %v1190
  %v1848 = vunpack.c.l.b16 %v1191
  %v1849 = vunpack.c.h.b16 %v1191
  %v1850 = vunpack.c.l.b16 %v1192
  %v1851 = vunpack.c.h.b16 %v1192
  %v1852 = vunpack.c.l.b16 %v1193
  %v1853 = vunpack.c.h.b16 %v1193
  %v1854 = vunpack.c.l.b16 %v1194
  %v1855 = vunpack.c.h.b16 %v1194
  %v1856 = vunpack.c.l.b16 %v1195
  %v1857 = vunpack.c.h.b16 %v1195
  %v1858 = vunpack.c.l.b16 %v1196
  %v1859 = vunpack.c.h.b16 %v1196
  %v1860 = vunpack.c.l.b16 %v1197
  %v1861 = vunpack.c.h.b16 %v1197
  %v1862 = vunpack.c.l.b16 %v1198
  %v1863 = vunpack.c.h.b16 %v1198
  %v1864 = vunpack.c.l.b16 %v1199
  %v1865 = vunpack.c.h.b16 %v1199
  %v1866 = vunpack.c.l.b16 %v1200
  %v1867 = vunpack.c.h.b16 %v1200
  %v1868 = vunpack.c.l.b16 %v1201
  %v1869 = vunpack.c.h.b16 %v1201
  %v1870 = vunpack.c.l.b16 %v1202
  %v1871 = vunpack.c.h.b16 %v1202
  %v1872 = vunpack.c.l.b16 %v1203
  %v1873 = vunpack.c.h.b16 %v1203
  %v1874 = vunpack.c.l.b16 %v1204
  %v1875 = vunpack.c.h.b16 %v1204
  %v1876 = vunpack.c.l.b16 %v1205
  %v1877 = vunpack.c.h.b16 %v1205
  %v1878 = vunpack.c.l.b16 %v1206
  %v1879 = vunpack.c.h.b16 %v1206
  %v1880 = vunpack.c.l.b16 %v1207
  %v1881 = vunpack.c.h.b16 %v1207
  %v1882 = vunpack.c.l.b16 %v1208
  %v1883 = vunpack.c.h.b16 %v1208
  %v1884 = vunpack.c.l.b16 %v1209
  %v1885 = vunpack.c.h.b16 %v1209
  %v1886 = vunpack.c.l.b16 %v1210
  %v1887 = vunpack.c.h.b16 %v1210
  %v1888 = vunpack.c.l.b16 %v1211
  %v1889 = vunpack.c.h.b16 %v1211
  %v1890 = vunpack.c.l.b16 %v1212
  %v1891 = vunpack.c.h.b16 %v1212
  %v1892 = vunpack.c.l.b16 %v1213
  %v1893 = vunpack.c.h.b16 %v1213
  %v1894 = vunpack.c.l.b16 %v1214
  %v1895 = vunpack.c.h.b16 %v1214
  %v1896 = vunpack.c.l.b16 %v1215
  %v1897 = vunpack.c.h.b16 %v1215
  %v1898 = vunpack.c.l.b16 %v1216
  %v1899 = vunpack.c.h.b16 %v1216
  %v1900 = vunpack.c.l.b16 %v1217
  %v1901 = vunpack.c.h.b16 %v1217
  %v1902 = vunpack.c.l.b16 %v1218
  %v1903 = vunpack.c.h.b16 %v1218
  %v1904 = vunpack.c.l.b16 %v1219
  %v1905 = vunpack.c.h.b16 %v1219
  %v1906 = vunpack.c.l.b16 %v1220
  %v1907 = vunpack.c.h.b16 %v1220
  %v1908 = vunpack.c.l.b16 %v1221
  %v1909 = vunpack.c.h.b16 %v1221
  %v1910 = vunpack.c.l.b16 %v1222
  %v1911 = vunpack.c.h.b16 %v1222
  %v1912 = vunpack.c.l.b16 %v1223
  %v1913 = vunpack.c.h.b16 %v1223
  %v1914 = vunpack.c.l.b16 %v1224
  %v1915 = vunpack.c.h.b16 %v1224
  %v1916 = vunpack.c.l.b16 %v1225
  %v1917 = vunpack.c.h.b16 %v1225
  %v1918 = vunpack.c.l.b16 %v1226
  %v1919 = vunpack.c.h.b16 %v1226
  %v1920 = vunpack.c.l.b16 %v1227
  %v1921 = vunpack.c.h.b16 %v1227
  %v1922 = vunpack.c.l.b16 %v1228
  %v1923 = vunpack.c.h.b16 %v1228
  %v1924 = vunpack.c.l.b16 %v1229
  %v1925 = vunpack.c.h.b16 %v1229
  %v1926 = vunpack.c.l.b16 %v1230
  %v1927 = vunpack.c.h.b16 %v1230
  %v1928 = vunpack.c.l.b16 %v1231
  %v1929 = vunpack.c.h.b16 %v1231
  %v1930 = vunpack.c.l.b16 %v1232
  %v1931 = vunpack.c.h.b16 %v1232
  %v1932 = vunpack.c.l.b16 %v1233
  %v1933 = vunpack.c.h.b16 %v1233
  %v1934 = vunpack.c.l.b16 %v1234
  %v1935 = vunpack.c.h.b16 %v1234
  %v1936 = vunpack.c.l.b16 %v1235
  %v1937 = vunpack.c.h.b16 %v1235
  %v1938 = vunpack.c.l.b16 %v1236
  %v1939 = vunpack.c.h.b16 %v1236
  %v1940 = vunpack.c.l.b16 %v1237
  %v1941 = vunpack.c.h.b16 %v1237
  %v1942 = vunpack.c.l.b16 %v1238
  %v1943 = vunpack.c.h.b16 %v1238
  %v1944 = vunpack.c.l.b16 %v1239
  %v1945 = vunpack.c.h.b16 %v1239
  %v1946 = vunpack.c.l.b16 %v1240
  %v1947 = vunpack.c.h.b16 %v1240
  %v1948 = vunpack.c.l.b16 %v1241
  %v1949 = vunpack.c.h.b16 %v1241
  %v1950 = vunpack.c.l.b16 %v1242
  %v1951 = vunpack.c.h.b16 %v1242
  %v1952 = vunpack.c.l.b16 %v1243
  %v1953 = vunpack.c.h.b16 %v1243
  %v1954 = vunpack.c.l.b16 %v1244
  %v1955 = vunpack.c.h.b16 %v1244
  %v1956 = vunpack.c.l.b16 %v1245
  %v1957 = vunpack.c.h.b16 %v1245
  %v1958 = vunpack.c.l.b16 %v1246
  %v1959 = vunpack.c.h.b16 %v1246
  %v1960 = vunpack.c.l.b16 %v1247
  %v1961 = vunpack.c.h.b16 %v1247
  %v1962 = vunpack.c.l.b16 %v1248
  %v1963 = vunpack.c.h.b16 %v1248
  %v1964 = vunpack.c.l.b16 %v1249
  %v1965 = vunpack.c.h.b16 %v1249
  %v1966 = vunpack.c.l.b16 %v1250
  %v1967 = vunpack.c.h.b16 %v1250
  %v1968 = vunpack.c.l.b16 %v1251
  %v1969 = vunpack.c.h.b16 %v1251
  %v1970 = vunpack.c.l.b16 %v1252
  %v1971 = vunpack.c.h.b16 %v1252
  %v1972 = vunpack.c.l.b16 %v1253
  %v1973 = vunpack.c.h.b16 %v1253
  %v1974 = vunpack.c.l.b16 %v1254
  %v1975 = vunpack.c.h.b16 %v1254
  %v1976 = vunpack.c.l.b16 %v1255
  %v1977 = vunpack.c.h.b16 %v1255
  %v1978 = vunpack.c.l.b16 %v1256
  %v1979 = vunpack.c.h.b16 %v1256
  %v1980 = vunpack.c.l.b16 %v1257
  %v1981 = vunpack.c.h.b16 %v1257
  %v1982 = vunpack.c.l.b16 %v1258
  %v1983 = vunpack.c.h.b16 %v1258
  %v1984 = vunpack.c.l.b16 %v1259
  %v1985 = vunpack.c.h.b16 %v1259
  %v1986 = vunpack.c.l.b16 %v1260
  %v1987 = vunpack.c.h.b16 %v1260
  %v1988 = vunpack.c.l.b16 %v1261
  %v1989 = vunpack.c.h.b16 %v1261
  %v1990 = vunpack.c.l.b16 %v1262
  %v1991 = vunpack.c.h.b16 %v1262
  %v1992 = vunpack.c.l.b16 %v1263
  %v1993 = vunpack.c.h.b16 %v1263
  %v1994 = vunpack.c.l.b16 %v1264
  %v1995 = vunpack.c.h.b16 %v1264
  %v1996 = vunpack.c.l.b16 %v1265
  %v1997 = vunpack.c.h.b16 %v1265
  %v1998 = vunpack.c.l.b16 %v1266
  %v1999 = vunpack.c.h.b16 %v1266
  %v2000 = vunpack.c.l.b16 %v1267
  %v2001 = vunpack.c.h.b16 %v1267
  %v2002 = vunpack.c.l.b16 %v1268
  %v2003 = vunpack.c.h.b16 %v1268
  %v2004 = vunpack.c.l.b16 %v1269
  %v2005 = vunpack.c.h.b16 %v1269
  %v2006 = vunpack.c.l.b16 %v1270
  %v2007 = vunpack.c.h.b16 %v1270
  %v2008 = vunpack.c.l.b16 %v1271
  %v2009 = vunpack.c.h.b16 %v1271
  %v2010 = vunpack.c.l.b16 %v1272
  %v2011 = vunpack.c.h.b16 %v1272
  %v2012 = vunpack.c.l.b16 %v1273
  %v2013 = vunpack.c.h.b16 %v1273
  %v2014 = vunpack.c.l.b16 %v1274
  %v2015 = vunpack.c.h.b16 %v1274
  %v2016 = vunpack.c.l.b16 %v1275
  %v2017 = vunpack.c.h.b16 %v1275
  %v2018 = vunpack.c.l.b16 %v1276
  %v2019 = vunpack.c.h.b16 %v1276
  %v2020 = vunpack.c.l.b16 %v1277
  %v2021 = vunpack.c.h.b16 %v1277
  %v2022 = vunpack.c.l.b16 %v1278
  %v2023 = vunpack.c.h.b16 %v1278
  %v2024 = vunpack.c.l.b16 %v1279
  %v2025 = vunpack.c.h.b16 %v1279
  %v2026 = vunpack.c.l.b16 %v1280
  %v2027 = vunpack.c.h.b16 %v1280
  %v2028 = vunpack.c.l.b16 %v1281
  %v2029 = vunpack.c.h.b16 %v1281
  %v2030 = vunpack.c.l.b16 %v1282
  %v2031 = vunpack.c.h.b16 %v1282
  %v2032 = vunpack.c.l.b16 %v1283
  %v2033 = vunpack.c.h.b16 %v1283
  %v2034 = vunpack.c.l.b16 %v1284
  %v2035 = vunpack.c.h.b16 %v1284
  %v2036 = vunpack.c.l.b16 %v1285
  %v2037 = vunpack.c.h.b16 %v1285
  %v2038 = vunpack.c.l.b16 %v1286
  %v2039 = vunpack.c.h.b16 %v1286
  %v2040 = vunpack.c.l.b16 %v1287
  %v2041 = vunpack.c.h.b16 %v1287
  %v2042 = vunpack.c.l.b16 %v1288
  %v2043 = vunpack.c.h.b16 %v1288
  %v2044 = vunpack.c.l.b16 %v1289
  %v2045 = vunpack.c.h.b16 %v1289
  %v2046 = vunpack.c.l.b16 %v1290
  %v2047 = vunpack.c.h.b16 %v1290
  %v2048 = vunpack.c.l.b16 %v1291
  %v2049 = vunpack.c.h.b16 %v1291
  %v2050 = vunpack.c.l.b16 %v1292
  %v2051 = vunpack.c.h.b16 %v1292
  %v2052 = vunpack.c.l.b16 %v1293
  %v2053 = vunpack.c.h.b16 %v1293
  %v2054 = vunpack.c.l.b16 %v1294
  %v2055 = vunpack.c.h.b16 %v1294
  %v2056 = vunpack.c.l.b16 %v1295
  %v2057 = vunpack.c.h.b16 %v1295
  %v2058 = vunpack.c.l.b16 %v1296
  %v2059 = vunpack.c.h.b16 %v1296
  %v2060 = vunpack.c.l.b16 %v1297
  %v2061 = vunpack.c.h.b16 %v1297
  %v2062 = vunpack.c.l.b16 %v1298
  %v2063 = vunpack.c.h.b16 %v1298
  %v2064 = vunpack.c.l.b16 %v1299
  %v2065 = vunpack.c.h.b16 %v1299
  %v2066 = vunpack.c.l.b16 %v1300
  %v2067 = vunpack.c.h.b16 %v1300
  %v2068 = vunpack.c.l.b16 %v1301
  %v2069 = vunpack.c.h.b16 %v1301
  %v2070 = vunpack.c.l.b16 %v1302
  %v2071 = vunpack.c.h.b16 %v1302
  %v2072 = vunpack.c.l.b16 %v1303
  %v2073 = vunpack.c.h.b16 %v1303
  %v2074 = vunpack.c.l.b16 %v1304
  %v2075 = vunpack.c.h.b16 %v1304
  %v2076 = vunpack.c.l.b16 %v1305
  %v2077 = vunpack.c.h.b16 %v1305
  %v2078 = vunpack.c.l.b16 %v1306
  %v2079 = vunpack.c.h.b16 %v1306
  %v2080 = vunpack.c.l.b16 %v1307
  %v2081 = vunpack.c.h.b16 %v1307
  %v2082 = vunpack.c.l.b16 %v1308
  %v2083 = vunpack.c.h.b16 %v1308
  %v2084 = vunpack.c.l.b16 %v1309
  %v2085 = vunpack.c.h.b16 %v1309
  %v2086 = vunpack.c.l.b16 %v1310
  %v2087 = vunpack.c.h.b16 %v1310
  %v2088 = vunpack.c.l.b16 %v1311
  %v2089 = vunpack.c.h.b16 %v1311
  %v2090 = vpack.c.b16 %v1582, %v1578
  %v2091 = vpack.c.b16 %v1583, %v1579
  %v2092 = vpack.c.b16 %v1584, %v1580
  %v2093 = vpack.c.b16 %v1585, %v1581
  %v2094 = vpack.c.b16 %v1590, %v1586
  %v2095 = vpack.c.b16 %v1591, %v1587
  %v2096 = vpack.c.b16 %v1592, %v1588
  %v2097 = vpack.c.b16 %v1593, %v1589
  %v2098 = vpack.c.b16 %v1598, %v1594
  %v2099 = vpack.c.b16 %v1599, %v1595
  %v2100 = vpack.c.b16 %v1600, %v1596
  %v2101 = vpack.c.b16 %v1601, %v1597
  %v2102 = vpack.c.b16 %v1606, %v1602
  %v2103 = vpack.c.b16 %v1607, %v1603
  %v2104 = vpack.c.b16 %v1608, %v1604
  %v2105 = vpack.c.b16 %v1609, %v1605
  %v2106 = vpack.c.b16 %v1614, %v1610
  %v2107 = vpack.c.b16 %v1615, %v1611
  %v2108 = vpack.c.b16 %v1616, %v1612
  %v2109 = vpack.c.b16 %v1617, %v1613
  %v2110 = vpack.c.b16 %v1622, %v1618
  %v2111 = vpack.c.b16 %v1623, %v1619
  %v2112 = vpack.c.b16 %v1624, %v1620
  %v2113 = vpack.c.b16 %v1625, %v1621
  %v2114 = vpack.c.b16 %v1630, %v1626
  %v2115 = vpack.c.b16 %v1631, %v1627
  %v2116 = vpack.c.b16 %v1632, %v1628
  %v2117 = vpack.c.b16 %v1633, %v1629
  %v2118 = vpack.c.b16 %v1638, %v1634
  %v2119 = vpack.c.b16 %v1639, %v1635
  %v2120 = vpack.c.b16 %v1640, %v1636
  %v2121 = vpack.c.b16 %v1641, %v1637
  %v2122 = vpack.c.b16 %v1646, %v1642
  %v2123 = vpack.c.b16 %v1647, %v1643
  %v2124 = vpack.c.b16 %v1648, %v1644
  %v2125 = vpack.c.b16 %v1649, %v1645
  %v2126 = vpack.c.b16 %v1654, %v1650
  %v2127 = vpack.c.b16 %v1655, %v1651
  %v2128 = vpack.c.b16 %v1656, %v1652
  %v2129 = vpack.c.b16 %v1657, %v1653
  %v2130 = vpack.c.b16 %v1662, %v1658
  %v2131 = vpack.c.b16 %v1663, %v1659
  %v2132 = vpack.c.b16 %v1664, %v1660
  %v2133 = vpack.c.b16 %v1665, %v1661
  %v2134 = vpack.c.b16 %v1670, %v1666
  %v2135 = vpack.c.b16 %v1671, %v1667
  %v2136 = vpack.c.b16 %v1672, %v1668
  %v2137 = vpack.c.b16 %v1673, %v1669
  %v2138 = vpack.c.b16 %v1678, %v1674
  %v2139 = vpack.c.b16 %v1679, %v1675
  %v2140 = vpack.c.b16 %v1680, %v1676
  %v2141 = vpack.c.b16 %v1681, %v1677
  %v2142 = vpack.c.b16 %v1686, %v1682
  %v2143 = vpack.c.b16 %v1687, %v1683
  %v2144 = vpack.c.b16 %v1688, %v1684
  %v2145 = vpack.c.b16 %v1689, %v1685
  %v2146 = vpack.c.b16 %v1694, %v1690
  %v2147 = vpack.c.b16 %v1695, %v1691
  %v2148 = vpack.c.b16 %v1696, %v1692
  %v2149 = vpack.c.b16 %v1697, %v1693
  %v2150 = vpack.c.b16 %v1702, %v1698
  %v2151 = vpack.c.b16 %v1703, %v1699
  %v2152 = vpack.c.b16 %v1704, %v1700
  %v2153 = vpack.c.b16 %v1705, %v1701
  %v2154 = vpack.c.b16 %v1710, %v1706
  %v2155 = vpack.c.b16 %v1711, %v1707
  %v2156 = vpack.c.b16 %v1712, %v1708
  %v2157 = vpack.c.b16 %v1713, %v1709
  %v2158 = vpack.c.b16 %v1718, %v1714
  %v2159 = vpack.c.b16 %v1719, %v1715
  %v2160 = vpack.c.b16 %v1720, %v1716
  %v2161 = vpack.c.b16 %v1721, %v1717
  %v2162 = vpack.c.b16 %v1726, %v1722
  %v2163 = vpack.c.b16 %v1727, %v1723
  %v2164 = vpack.c.b16 %v1728, %v1724
  %v2165 = vpack.c.b16 %v1729, %v1725
  %v2166 = vpack.c.b16 %v1734, %v1730
  %v2167 = vpack.c.b16 %v1735, %v1731
  %v2168 = vpack.c.b16 %v1736, %v1732
  %v2169 = vpack.c.b16 %v1737, %v1733
  %v2170 = vpack.c.b16 %v1742, %v1738
  %v2171 = vpack.c.b16 %v1743, %v1739
  %v2172 = vpack.c.b16 %v1744, %v1740
  %v2173 = vpack.c.b16 %v1745, %v1741
  %v2174 = vpack.c.b16 %v1750, %v1746
  %v2175 = vpack.c.b16 %v1751, %v1747
  %v2176 = vpack.c.b16 %v1752, %v1748
  %v2177 = vpack.c.b16 %v1753, %v1749
  %v2178 = vpack.c.b16 %v1758, %v1754
  %v2179 = vpack.c.b16 %v1759, %v1755
  %v2180 = vpack.c.b16 %v1760, %v1756
  %v2181 = vpack.c.b16 %v1761, %v1757
  %v2182 = vpack.c.b16 %v1766, %v1762
  %v2183 = vpack.c.b16 %v1767, %v1763
  %v2184 = vpack.c.b16 %v1768, %v1764
  %v2185 = vpack.c.b16 %v1769, %v1765
  %v2186 = vpack.c.b16 %v1774, %v1770
  %v2187 = vpack.c.b16 %v1775, %v1771
  %v2188 = vpack.c.b16 %v1776, %v1772
  %v2189 = vpack.c.b16 %v1777, %v1773
  %v2190 = vpack.c.b16 %v1782, %v1778
  %v2191 = vpack.c.b16 %v1783, %v1779
  %v2192 = vpack.c.b16 %v1784, %v1780
  %v2193 = vpack.c.b16 %v1785, %v1781
  %v2194 = vpack.c.b16 %v1790, %v1786
  %v2195 = vpack.c.b16 %v1791, %v1787
  %v2196 = vpack.c.b16 %v1792, %v1788
  %v2197 = vpack.c.b16 %v1793, %v1789
  %v2198 = vpack.c.b16 %v1798, %v1794
  %v2199 = vpack.c.b16 %v1799, %v1795
  %v2200 = vpack.c.b16 %v1800, %v1796
  %v2201 = vpack.c.b16 %v1801, %v1797
  %v2202 = vpack.c.b16 %v1806, %v1802
  %v2203 = vpack.c.b16 %v1807, %v1803
  %v2204 = vpack.c.b16 %v1808, %v1804
  %v2205 = vpack.c.b16 %v1809, %v1805
  %v2206 = vpack.c.b16 %v1814, %v1810
  %v2207 = vpack.c.b16 %v1815, %v1811
  %v2208 = vpack.c.b16 %v1816, %v1812
  %v2209 = vpack.c.b16 %v1817, %v1813
  %v2210 = vpack.c.b16 %v1822, %v1818
  %v2211 = vpack.c.b16 %v1823, %v1819
  %v2212 = vpack.c.b16 %v1824, %v1820
  %v2213 = vpack.c.b16 %v1825, %v1821
  %v2214 = vpack.c.b16 %v1830, %v1826
  %v2215 = vpack.c.b16 %v1831, %v1827
  %v2216 = vpack.c.b16 %v1832, %v1828
  %v2217 = vpack.c.b16 %v1833, %v1829
  %v2218 = vpack.c.b16 %v1838, %v1834
  %v2219 = vpack.c.b16 %v1839, %v1835
  %v2220 = vpack.c.b16 %v1840, %v1836
  %v2221 = vpack.c.b16 %v1841, %v1837
  %v2222 = vpack.c.b16 %v1846, %v1842
  %v2223 = vpack.c.b16 %v1847, %v1843
  %v2224 = vpack.c.b16 %v1848, %v1844
  %v2225 = vpack.c.b16 %v1849, %v1845
  %v2226 = vpack.c.b16 %v1854, %v1850
  %v2227 = vpack.c.b16 %v1855, %v1851
  %v2228 = vpack.c.b16 %v1856, %v1852
  %v2229 = vpack.c.b16 %v1857, %v1853
  %v2230 = vpack.c.b16 %v1862, %v1858
  %v2231 = vpack.c.b16 %v1863, %v1859
  %v2232 = vpack.c.b16 %v1864, %v1860
  %v2233 = vpack.c.b16 %v1865, %v1861
  %v2234 = vpack.c.b16 %v1870, %v1866
  %v2235 = vpack.c.b16 %v1871, %v1867
  %v2236 = vpack.c.b16 %v1872, %v1868
  %v2237 = vpack.c.b16 %v1873, %v1869
  %v2238 = vpack.c.b16 %v1878, %v1874
  %v2239 = vpack.c.b16 %v1879, %v1875
  %v2240 = vpack.c.b16 %v1880, %v1876
  %v2241 = vpack.c.b16 %v1881, %v1877
  %v2242 = vpack.c.b16 %v1886, %v1882
  %v2243 = vpack.c.b16 %v1887, %v1883
  %v2244 = vpack.c.b16 %v1888, %v1884
  %v2245 = vpack.c.b16 %v1889, %v1885
  %v2246 = vpack.c.b16 %v1894, %v1890
  %v2247 = vpack.c.b16 %v1895, %v1891
  %v2248 = vpack.c.b16 %v1896, %v1892
  %v2249 = vpack.c.b16 %v1897, %v1893
  %v2250 = vpack.c.b16 %v1902, %v1898
  %v2251 = vpack.c.b16 %v1903, %v1899
  %v2252 = vpack.c.b16 %v1904, %v1900
  %v2253 = vpack.c.b16 %v1905, %v1901
  %v2254 = vpack.c.b16 %v1910, %v1906
  %v2255 = vpack.c.b16 %v1911, %v1907
  %v2256 = vpack.c.b16 %v1912, %v1908
  %v2257 = vpack.c.b16 %v1913, %v1909
  %v2258 = vpack.c.b16 %v1918, %v1914
  %v2259 = vpack.c.b16 %v1919, %v1915
  %v2260 = vpack.c.b16 %v1920, %v1916
  %v2261 = vpack.c.b16 %v1921, %v1917
  %v2262 = vpack.c.b16 %v1926, %v1922
  %v2263 = vpack.c.b16 %v1927, %v1923
  %v2264 = vpack.c.b16 %v1928, %v1924
  %v2265 = vpack.c.b16 %v1929, %v1925
  %v2266 = vpack.c.b16 %v1934, %v1930
  %v2267 = vpack.c.b16 %v1935, %v1931
  %v2268 = vpack.c.b16 %v1936, %v1932
  %v2269 = vpack.c.b16 %v1937, %v1933
  %v2270 = vpack.c.b16 %v1942, %v1938
  %v2271 = vpack.c.b16 %v1943, %v1939
  %v2272 = vpack.c.b16 %v1944, %v1940
  %v2273 = vpack.c.b16 %v1945, %v1941
  %v2274 = vpack.c.b16 %v1950, %v1946
  %v2275 = vpack.c.b16 %v1951, %v1947
  %v2276 = vpack.c.b16 %v1952, %v1948
  %v2277 = vpack.c.b16 %v1953, %v1949
  %v2278 = vpack.c.b16 %v1958, %v1954
  %v2279 = vpack.c.b16 %v1959, %v1955
  %v2280 = vpack.c.b16 %v1960, %v1956
  %v2281 = vpack.c.b16 %v1961, %v1957
  %v2282 = vpack.c.b16 %v1966, %v1962
  %v2283 = vpack.c.b16 %v1967, %v1963
  %v2284 = vpack.c.b16 %v1968, %v1964
  %v2285 = vpack.c.b16 %v1969, %v1965
  %v2286 = vpack.c.b16 %v1974, %v1970
  %v2287 = vpack.c.b16 %v1975, %v1971
  %v2288 = vpack.c.b16 %v1976, %v1972
  %v2289 = vpack.c.b16 %v1977, %v1973
  %v2290 = vpack.c.b16 %v1982, %v1978
  %v2291 = vpack.c.b16 %v1983, %v1979
  %v2292 = vpack.c.b16 %v1984, %v1980
  %v2293 = vpack.c.b16 %v1985, %v1981
  %v2294 = vpack.c.b16 %v1990, %v1986
  %v2295 = vpack.c.b16 %v1991, %v1987
  %v2296 = vpack.c.b16 %v1992, %v1988
  %v2297 = vpack.c.b16 %v1993, %v1989
  %v2298 = vpack.c.b16 %v1998, %v1994
  %v2299 = vpack.c.b16 %v1999, %v1995
  %v2300 = vpack.c.b16 %v2000, %v1996
  %v2301 = vpack.c.b16 %v2001, %v1997
  %v2302 = vpack.c.b16 %v2006, %v2002
  %v2303 = vpack.c.b16 %v2007, %v2003
  %v2304 = vpack.c.b16 %v2008, %v2004
  %v2305 = vpack.c.b16 %v2009, %v2005
  %v2306 = vpack.c.b16 %v2014, %v2010
  %v2307 = vpack.c.b16 %v2015, %v2011
  %v2308 = vpack.c.b16 %v2016, %v2012
  %v2309 = vpack.c.b16 %v2017, %v2013
  %v2310 = vpack.c.b16 %v2022, %v2018
  %v2311 = vpack.c.b16 %v2023, %v2019
  %v2312 = vpack.c.b16 %v2024, %v2020
  %v2313 = vpack.c.b16 %v2025, %v2021
  %v2314 = vpack.c.b16 %v2030, %v2026
  %v2315 = vpack.c.b16 %v2031, %v2027
  %v2316 = vpack.c.b16 %v2032, %v2028
  %v2317 = vpack.c.b16 %v2033, %v2029
  %v2318 = vpack.c.b16 %v2038, %v2034
  %v2319 = vpack.c.b16 %v2039, %v2035
  %v2320 = vpack.c.b16 %v2040, %v2036
  %v2321 = vpack.c.b16 %v2041, %v2037
  %v2322 = vpack.c.b16 %v2046, %v2042
  %v2323 = vpack.c.b16 %v2047, %v2043
  %v2324 = vpack.c.b16 %v2048, %v2044
  %v2325 = vpack.c.b16 %v2049, %v2045
  %v2326 = vpack.c.b16 %v2054, %v2050
  %v2327 = vpack.c.b16 %v2055, %v2051
  %v2328 = vpack.c.b16 %v2056, %v2052
  %v2329 = vpack.c.b16 %v2057, %v2053
  %v2330 = vpack.c.b16 %v2062, %v2058
  %v2331 = vpack.c.b16 %v2063, %v2059
  %v2332 = vpack.c.b16 %v2064, %v2060
  %v2333 = vpack.c.b16 %v2065, %v2061
  %v2334 = vpack.c.b16 %v2070, %v2066
  %v2335 = vpack.c.b16 %v2071, %v2067
  %v2336 = vpack.c.b16 %v2072, %v2068
  %v2337 = vpack.c.b16 %v2073, %v2069
  %v2338 = vpack.c.b16 %v2078, %v2074
  %v2339 = vpack.c.b16 %v2079, %v2075
  %v2340 = vpack.c.b16 %v2080, %v2076
  %v2341 = vpack.c.b16 %v2081, %v2077
  %v2342 = vpack.c.b16 %v2086, %v2082
  %v2343 = vpack.c.b16 %v2087, %v2083
  %v2344 = vpack.c.b16 %v2088, %v2084
  %v2345 = vpack.c.b16 %v2089, %v2085
  %2602 = vmatpush.bf16.msra.mxu0 %v2118
  %2603 = vmatpush.bf16.msra.mxu0 %v2114
  %2604 = vmatpush.bf16.msra.mxu0 %v2110
  %2605 = vmatpush.bf16.msra.mxu0 %v2106
  %2606 = vmatpush.bf16.msra.mxu0 %v2102
  %2607 = vmatpush.bf16.msra.mxu0 %v2098
  %2608 = vmatpush.bf16.msra.mxu0 %v2094
  %2609 = vmatpush.bf16.msra.mxu0 %v2090
  %2610 = vmatmul.bf16.gmra.mxu0 %v1048
  %v2611 = vpop.f32.mrf.mxu0
  %v2612 = vadd.f32 %v1314, %v2611
  %v2613 = vpop.f32.mrf.mxu0
  %v2614 = vadd.f32 %v1314, %v2613
  %2615 = vdwg.mxu0
  %2616 = vmatpush.bf16.msra.mxu0 %v2150
  %2617 = vmatpush.bf16.msra.mxu0 %v2146
  %2618 = vmatpush.bf16.msra.mxu0 %v2142
  %2619 = vmatpush.bf16.msra.mxu0 %v2138
  %2620 = vmatpush.bf16.msra.mxu0 %v2134
  %2621 = vmatpush.bf16.msra.mxu0 %v2130
  %2622 = vmatpush.bf16.msra.mxu0 %v2126
  %2623 = vmatpush.bf16.msra.mxu0 %v2122
  %2624 = vmatmul.bf16.gmra.mxu0 %v1049
  %v2625 = vpop.f32.mrf.mxu0
  %v2626 = vadd.f32 %v2612, %v2625
  %v2627 = vpop.f32.mrf.mxu0
  %v2628 = vadd.f32 %v2614, %v2627
  %2629 = vdwg.mxu0
  %2630 = vmatpush.bf16.msra.mxu0 %v2182
  %2631 = vmatpush.bf16.msra.mxu0 %v2178
  %2632 = vmatpush.bf16.msra.mxu0 %v2174
  %2633 = vmatpush.bf16.msra.mxu0 %v2170
  %2634 = vmatpush.bf16.msra.mxu0 %v2166
  %2635 = vmatpush.bf16.msra.mxu0 %v2162
  %2636 = vmatpush.bf16.msra.mxu0 %v2158
  %2637 = vmatpush.bf16.msra.mxu0 %v2154
  %2638 = vmatmul.bf16.gmra.mxu0 %v1050
  %v2639 = vpop.f32.mrf.mxu0
  %v2640 = vadd.f32 %v2626, %v2639
  %v2641 = vpop.f32.mrf.mxu0
  %v2642 = vadd.f32 %v2628, %v2641
  %2643 = vdwg.mxu0
  %2644 = vmatpush.bf16.msra.mxu0 %v2214
  %2645 = vmatpush.bf16.msra.mxu0 %v2210
  %2646 = vmatpush.bf16.msra.mxu0 %v2206
  %2647 = vmatpush.bf16.msra.mxu0 %v2202
  %2648 = vmatpush.bf16.msra.mxu0 %v2198
  %2649 = vmatpush.bf16.msra.mxu0 %v2194
  %2650 = vmatpush.bf16.msra.mxu0 %v2190
  %2651 = vmatpush.bf16.msra.mxu0 %v2186
  %2652 = vmatmul.bf16.gmra.mxu0 %v1051
  %v2653 = vpop.f32.mrf.mxu0
  %v2654 = vadd.f32 %v2640, %v2653
  %v2655 = vpop.f32.mrf.mxu0
  %v2656 = vadd.f32 %v2642, %v2655
  %2657 = vdwg.mxu0
  %2658 = vmatpush.bf16.msra.mxu0 %v2246
  %2659 = vmatpush.bf16.msra.mxu0 %v2242
  %2660 = vmatpush.bf16.msra.mxu0 %v2238
  %2661 = vmatpush.bf16.msra.mxu0 %v2234
  %2662 = vmatpush.bf16.msra.mxu0 %v2230
  %2663 = vmatpush.bf16.msra.mxu0 %v2226
  %2664 = vmatpush.bf16.msra.mxu0 %v2222
  %2665 = vmatpush.bf16.msra.mxu0 %v2218
  %2666 = vmatmul.bf16.gmra.mxu0 %v1052
  %v2667 = vpop.f32.mrf.mxu0
  %v2668 = vadd.f32 %v2654, %v2667
  %v2669 = vpop.f32.mrf.mxu0
  %v2670 = vadd.f32 %v2656, %v2669
  %2671 = vdwg.mxu0
  %2672 = vmatpush.bf16.msra.mxu0 %v2278
  %2673 = vmatpush.bf16.msra.mxu0 %v2274
  %2674 = vmatpush.bf16.msra.mxu0 %v2270
  %2675 = vmatpush.bf16.msra.mxu0 %v2266
  %2676 = vmatpush.bf16.msra.mxu0 %v2262
  %2677 = vmatpush.bf16.msra.mxu0 %v2258
  %2678 = vmatpush.bf16.msra.mxu0 %v2254
  %2679 = vmatpush.bf16.msra.mxu0 %v2250
  %2680 = vmatmul.bf16.gmra.mxu0 %v1053
  %v2681 = vpop.f32.mrf.mxu0
  %v2682 = vadd.f32 %v2668, %v2681
  %v2683 = vpop.f32.mrf.mxu0
  %v2684 = vadd.f32 %v2670, %v2683
  %2685 = vdwg.mxu0
  %2686 = vmatpush.bf16.msra.mxu0 %v2310
  %2687 = vmatpush.bf16.msra.mxu0 %v2306
  %2688 = vmatpush.bf16.msra.mxu0 %v2302
  %2689 = vmatpush.bf16.msra.mxu0 %v2298
  %2690 = vmatpush.bf16.msra.mxu0 %v2294
  %2691 = vmatpush.bf16.msra.mxu0 %v2290
  %2692 = vmatpush.bf16.msra.mxu0 %v2286
  %2693 = vmatpush.bf16.msra.mxu0 %v2282
  %2694 = vmatmul.bf16.gmra.mxu0 %v1054
  %v2695 = vpop.f32.mrf.mxu0
  %v2696 = vadd.f32 %v2682, %v2695
  %v2697 = vpop.f32.mrf.mxu0
  %v2698 = vadd.f32 %v2684, %v2697
  %2699 = vdwg.mxu0
  %2700 = vmatpush.bf16.msra.mxu0 %v2342
  %2701 = vmatpush.bf16.msra.mxu0 %v2338
  %2702 = vmatpush.bf16.msra.mxu0 %v2334
  %2703 = vmatpush.bf16.msra.mxu0 %v2330
  %2704 = vmatpush.bf16.msra.mxu0 %v2326
  %2705 = vmatpush.bf16.msra.mxu0 %v2322
  %2706 = vmatpush.bf16.msra.mxu0 %v2318
  %2707 = vmatpush.bf16.msra.mxu0 %v2314
  %2708 = vmatmul.bf16.gmra.mxu0 %v1055
  %v2709 = vpop.f32.mrf.mxu0
  %v2710 = vadd.f32 %v2696, %v2709
  %v2711 = vpop.f32.mrf.mxu0
  %v2712 = vadd.f32 %v2698, %v2711
  %2713 = vdwg.mxu0
  %2714 = vmatpush.bf16.msra.mxu0 %v2119
  %2715 = vmatpush.bf16.msra.mxu0 %v2115
  %2716 = vmatpush.bf16.msra.mxu0 %v2111
  %2717 = vmatpush.bf16.msra.mxu0 %v2107
  %2718 = vmatpush.bf16.msra.mxu0 %v2103
  %2719 = vmatpush.bf16.msra.mxu0 %v2099
  %2720 = vmatpush.bf16.msra.mxu0 %v2095
  %2721 = vmatpush.bf16.msra.mxu0 %v2091
  %2722 = vmatmul.bf16.gmra.mxu0 %v1048
  %v2723 = vpop.f32.mrf.mxu0
  %v2724 = vadd.f32 %v1315, %v2723
  %v2725 = vpop.f32.mrf.mxu0
  %v2726 = vadd.f32 %v1315, %v2725
  %2727 = vdwg.mxu0
  %2728 = vmatpush.bf16.msra.mxu0 %v2151
  %2729 = vmatpush.bf16.msra.mxu0 %v2147
  %2730 = vmatpush.bf16.msra.mxu0 %v2143
  %2731 = vmatpush.bf16.msra.mxu0 %v2139
  %2732 = vmatpush.bf16.msra.mxu0 %v2135
  %2733 = vmatpush.bf16.msra.mxu0 %v2131
  %2734 = vmatpush.bf16.msra.mxu0 %v2127
  %2735 = vmatpush.bf16.msra.mxu0 %v2123
  %2736 = vmatmul.bf16.gmra.mxu0 %v1049
  %v2737 = vpop.f32.mrf.mxu0
  %v2738 = vadd.f32 %v2724, %v2737
  %v2739 = vpop.f32.mrf.mxu0
  %v2740 = vadd.f32 %v2726, %v2739
  %2741 = vdwg.mxu0
  %2742 = vmatpush.bf16.msra.mxu0 %v2183
  %2743 = vmatpush.bf16.msra.mxu0 %v2179
  %2744 = vmatpush.bf16.msra.mxu0 %v2175
  %2745 = vmatpush.bf16.msra.mxu0 %v2171
  %2746 = vmatpush.bf16.msra.mxu0 %v2167
  %2747 = vmatpush.bf16.msra.mxu0 %v2163
  %2748 = vmatpush.bf16.msra.mxu0 %v2159
  %2749 = vmatpush.bf16.msra.mxu0 %v2155
  %2750 = vmatmul.bf16.gmra.mxu0 %v1050
  %v2751 = vpop.f32.mrf.mxu0
  %v2752 = vadd.f32 %v2738, %v2751
  %v2753 = vpop.f32.mrf.mxu0
  %v2754 = vadd.f32 %v2740, %v2753
  %2755 = vdwg.mxu0
  %2756 = vmatpush.bf16.msra.mxu0 %v2215
  %2757 = vmatpush.bf16.msra.mxu0 %v2211
  %2758 = vmatpush.bf16.msra.mxu0 %v2207
  %2759 = vmatpush.bf16.msra.mxu0 %v2203
  %2760 = vmatpush.bf16.msra.mxu0 %v2199
  %2761 = vmatpush.bf16.msra.mxu0 %v2195
  %2762 = vmatpush.bf16.msra.mxu0 %v2191
  %2763 = vmatpush.bf16.msra.mxu0 %v2187
  %2764 = vmatmul.bf16.gmra.mxu0 %v1051
  %v2765 = vpop.f32.mrf.mxu0
  %v2766 = vadd.f32 %v2752, %v2765
  %v2767 = vpop.f32.mrf.mxu0
  %v2768 = vadd.f32 %v2754, %v2767
  %2769 = vdwg.mxu0
  %2770 = vmatpush.bf16.msra.mxu0 %v2247
  %2771 = vmatpush.bf16.msra.mxu0 %v2243
  %2772 = vmatpush.bf16.msra.mxu0 %v2239
  %2773 = vmatpush.bf16.msra.mxu0 %v2235
  %2774 = vmatpush.bf16.msra.mxu0 %v2231
  %2775 = vmatpush.bf16.msra.mxu0 %v2227
  %2776 = vmatpush.bf16.msra.mxu0 %v2223
  %2777 = vmatpush.bf16.msra.mxu0 %v2219
  %2778 = vmatmul.bf16.gmra.mxu0 %v1052
  %v2779 = vpop.f32.mrf.mxu0
  %v2780 = vadd.f32 %v2766, %v2779
  %v2781 = vpop.f32.mrf.mxu0
  %v2782 = vadd.f32 %v2768, %v2781
  %2783 = vdwg.mxu0
  %2784 = vmatpush.bf16.msra.mxu0 %v2279
  %2785 = vmatpush.bf16.msra.mxu0 %v2275
  %2786 = vmatpush.bf16.msra.mxu0 %v2271
  %2787 = vmatpush.bf16.msra.mxu0 %v2267
  %2788 = vmatpush.bf16.msra.mxu0 %v2263
  %2789 = vmatpush.bf16.msra.mxu0 %v2259
  %2790 = vmatpush.bf16.msra.mxu0 %v2255
  %2791 = vmatpush.bf16.msra.mxu0 %v2251
  %2792 = vmatmul.bf16.gmra.mxu0 %v1053
  %v2793 = vpop.f32.mrf.mxu0
  %v2794 = vadd.f32 %v2780, %v2793
  %v2795 = vpop.f32.mrf.mxu0
  %v2796 = vadd.f32 %v2782, %v2795
  %2797 = vdwg.mxu0
  %2798 = vmatpush.bf16.msra.mxu0 %v2311
  %2799 = vmatpush.bf16.msra.mxu0 %v2307
  %2800 = vmatpush.bf16.msra.mxu0 %v2303
  %2801 = vmatpush.bf16.msra.mxu0 %v2299
  %2802 = vmatpush.bf16.msra.mxu0 %v2295
  %2803 = vmatpush.bf16.msra.mxu0 %v2291
  %2804 = vmatpush.bf16.msra.mxu0 %v2287
  %2805 = vmatpush.bf16.msra.mxu0 %v2283
  %2806 = vmatmul.bf16.gmra.mxu0 %v1054
  %v2807 = vpop.f32.mrf.mxu0
  %v2808 = vadd.f32 %v2794, %v2807
  %v2809 = vpop.f32.mrf.mxu0
  %v2810 = vadd.f32 %v2796, %v2809
  %2811 = vdwg.mxu0
  %2812 = vmatpush.bf16.msra.mxu0 %v2343
  %2813 = vmatpush.bf16.msra.mxu0 %v2339
  %2814 = vmatpush.bf16.msra.mxu0 %v2335
  %2815 = vmatpush.bf16.msra.mxu0 %v2331
  %2816 = vmatpush.bf16.msra.mxu0 %v2327
  %2817 = vmatpush.bf16.msra.mxu0 %v2323
  %2818 = vmatpush.bf16.msra.mxu0 %v2319
  %2819 = vmatpush.bf16.msra.mxu0 %v2315
  %2820 = vmatmul.bf16.gmra.mxu0 %v1055
  %v2821 = vpop.f32.mrf.mxu0
  %v2822 = vadd.f32 %v2808, %v2821
  %v2823 = vpop.f32.mrf.mxu0
  %v2824 = vadd.f32 %v2810, %v2823
  %2825 = vdwg.mxu0
  %2826 = vmatpush.bf16.msra.mxu0 %v2120
  %2827 = vmatpush.bf16.msra.mxu0 %v2116
  %2828 = vmatpush.bf16.msra.mxu0 %v2112
  %2829 = vmatpush.bf16.msra.mxu0 %v2108
  %2830 = vmatpush.bf16.msra.mxu0 %v2104
  %2831 = vmatpush.bf16.msra.mxu0 %v2100
  %2832 = vmatpush.bf16.msra.mxu0 %v2096
  %2833 = vmatpush.bf16.msra.mxu0 %v2092
  %2834 = vmatmul.bf16.gmra.mxu0 %v1048
  %v2835 = vpop.f32.mrf.mxu0
  %v2836 = vadd.f32 %v1316, %v2835
  %v2837 = vpop.f32.mrf.mxu0
  %v2838 = vadd.f32 %v1316, %v2837
  %2839 = vdwg.mxu0
  %2840 = vmatpush.bf16.msra.mxu0 %v2152
  %2841 = vmatpush.bf16.msra.mxu0 %v2148
  %2842 = vmatpush.bf16.msra.mxu0 %v2144
  %2843 = vmatpush.bf16.msra.mxu0 %v2140
  %2844 = vmatpush.bf16.msra.mxu0 %v2136
  %2845 = vmatpush.bf16.msra.mxu0 %v2132
  %2846 = vmatpush.bf16.msra.mxu0 %v2128
  %2847 = vmatpush.bf16.msra.mxu0 %v2124
  %2848 = vmatmul.bf16.gmra.mxu0 %v1049
  %v2849 = vpop.f32.mrf.mxu0
  %v2850 = vadd.f32 %v2836, %v2849
  %v2851 = vpop.f32.mrf.mxu0
  %v2852 = vadd.f32 %v2838, %v2851
  %2853 = vdwg.mxu0
  %2854 = vmatpush.bf16.msra.mxu0 %v2184
  %2855 = vmatpush.bf16.msra.mxu0 %v2180
  %2856 = vmatpush.bf16.msra.mxu0 %v2176
  %2857 = vmatpush.bf16.msra.mxu0 %v2172
  %2858 = vmatpush.bf16.msra.mxu0 %v2168
  %2859 = vmatpush.bf16.msra.mxu0 %v2164
  %2860 = vmatpush.bf16.msra.mxu0 %v2160
  %2861 = vmatpush.bf16.msra.mxu0 %v2156
  %2862 = vmatmul.bf16.gmra.mxu0 %v1050
  %v2863 = vpop.f32.mrf.mxu0
  %v2864 = vadd.f32 %v2850, %v2863
  %v2865 = vpop.f32.mrf.mxu0
  %v2866 = vadd.f32 %v2852, %v2865
  %2867 = vdwg.mxu0
  %2868 = vmatpush.bf16.msra.mxu0 %v2216
  %2869 = vmatpush.bf16.msra.mxu0 %v2212
  %2870 = vmatpush.bf16.msra.mxu0 %v2208
  %2871 = vmatpush.bf16.msra.mxu0 %v2204
  %2872 = vmatpush.bf16.msra.mxu0 %v2200
  %2873 = vmatpush.bf16.msra.mxu0 %v2196
  %2874 = vmatpush.bf16.msra.mxu0 %v2192
  %2875 = vmatpush.bf16.msra.mxu0 %v2188
  %2876 = vmatmul.bf16.gmra.mxu0 %v1051
  %v2877 = vpop.f32.mrf.mxu0
  %v2878 = vadd.f32 %v2864, %v2877
  %v2879 = vpop.f32.mrf.mxu0
  %v2880 = vadd.f32 %v2866, %v2879
  %2881 = vdwg.mxu0
  %2882 = vmatpush.bf16.msra.mxu0 %v2248
  %2883 = vmatpush.bf16.msra.mxu0 %v2244
  %2884 = vmatpush.bf16.msra.mxu0 %v2240
  %2885 = vmatpush.bf16.msra.mxu0 %v2236
  %2886 = vmatpush.bf16.msra.mxu0 %v2232
  %2887 = vmatpush.bf16.msra.mxu0 %v2228
  %2888 = vmatpush.bf16.msra.mxu0 %v2224
  %2889 = vmatpush.bf16.msra.mxu0 %v2220
  %2890 = vmatmul.bf16.gmra.mxu0 %v1052
  %v2891 = vpop.f32.mrf.mxu0
  %v2892 = vadd.f32 %v2878, %v2891
  %v2893 = vpop.f32.mrf.mxu0
  %v2894 = vadd.f32 %v2880, %v2893
  %2895 = vdwg.mxu0
  %2896 = vmatpush.bf16.msra.mxu0 %v2280
  %2897 = vmatpush.bf16.msra.mxu0 %v2276
  %2898 = vmatpush.bf16.msra.mxu0 %v2272
  %2899 = vmatpush.bf16.msra.mxu0 %v2268
  %2900 = vmatpush.bf16.msra.mxu0 %v2264
  %2901 = vmatpush.bf16.msra.mxu0 %v2260
  %2902 = vmatpush.bf16.msra.mxu0 %v2256
  %2903 = vmatpush.bf16.msra.mxu0 %v2252
  %2904 = vmatmul.bf16.gmra.mxu0 %v1053
  %v2905 = vpop.f32.mrf.mxu0
  %v2906 = vadd.f32 %v2892, %v2905
  %v2907 = vpop.f32.mrf.mxu0
  %v2908 = vadd.f32 %v2894, %v2907
  %2909 = vdwg.mxu0
  %2910 = vmatpush.bf16.msra.mxu0 %v2312
  %2911 = vmatpush.bf16.msra.mxu0 %v2308
  %2912 = vmatpush.bf16.msra.mxu0 %v2304
  %2913 = vmatpush.bf16.msra.mxu0 %v2300
  %2914 = vmatpush.bf16.msra.mxu0 %v2296
  %2915 = vmatpush.bf16.msra.mxu0 %v2292
  %2916 = vmatpush.bf16.msra.mxu0 %v2288
  %2917 = vmatpush.bf16.msra.mxu0 %v2284
  %2918 = vmatmul.bf16.gmra.mxu0 %v1054
  %v2919 = vpop.f32.mrf.mxu0
  %v2920 = vadd.f32 %v2906, %v2919
  %v2921 = vpop.f32.mrf.mxu0
  %v2922 = vadd.f32 %v2908, %v2921
  %2923 = vdwg.mxu0
  %2924 = vmatpush.bf16.msra.mxu0 %v2344
  %2925 = vmatpush.bf16.msra.mxu0 %v2340
  %2926 = vmatpush.bf16.msra.mxu0 %v2336
  %2927 = vmatpush.bf16.msra.mxu0 %v2332
  %2928 = vmatpush.bf16.msra.mxu0 %v2328
  %2929 = vmatpush.bf16.msra.mxu0 %v2324
  %2930 = vmatpush.bf16.msra.mxu0 %v2320
  %2931 = vmatpush.bf16.msra.mxu0 %v2316
  %2932 = vmatmul.bf16.gmra.mxu0 %v1055
  %v2933 = vpop.f32.mrf.mxu0
  %v2934 = vadd.f32 %v2920, %v2933
  %v2935 = vpop.f32.mrf.mxu0
  %v2936 = vadd.f32 %v2922, %v2935
  %2937 = vdwg.mxu0
  %2938 = vmatpush.bf16.msra.mxu0 %v2121
  %2939 = vmatpush.bf16.msra.mxu0 %v2117
  %2940 = vmatpush.bf16.msra.mxu0 %v2113
  %2941 = vmatpush.bf16.msra.mxu0 %v2109
  %2942 = vmatpush.bf16.msra.mxu0 %v2105
  %2943 = vmatpush.bf16.msra.mxu0 %v2101
  %2944 = vmatpush.bf16.msra.mxu0 %v2097
  %2945 = vmatpush.bf16.msra.mxu0 %v2093
  %2946 = vmatmul.bf16.gmra.mxu0 %v1048
  %v2947 = vpop.f32.mrf.mxu0
  %v2948 = vadd.f32 %v1317, %v2947
  %v2949 = vpop.f32.mrf.mxu0
  %v2950 = vadd.f32 %v1317, %v2949
  %2951 = vdwg.mxu0
  %2952 = vmatpush.bf16.msra.mxu0 %v2153
  %2953 = vmatpush.bf16.msra.mxu0 %v2149
  %2954 = vmatpush.bf16.msra.mxu0 %v2145
  %2955 = vmatpush.bf16.msra.mxu0 %v2141
  %2956 = vmatpush.bf16.msra.mxu0 %v2137
  %2957 = vmatpush.bf16.msra.mxu0 %v2133
  %2958 = vmatpush.bf16.msra.mxu0 %v2129
  %2959 = vmatpush.bf16.msra.mxu0 %v2125
  %2960 = vmatmul.bf16.gmra.mxu0 %v1049
  %v2961 = vpop.f32.mrf.mxu0
  %v2962 = vadd.f32 %v2948, %v2961
  %v2963 = vpop.f32.mrf.mxu0
  %v2964 = vadd.f32 %v2950, %v2963
  %2965 = vdwg.mxu0
  %2966 = vmatpush.bf16.msra.mxu0 %v2185
  %2967 = vmatpush.bf16.msra.mxu0 %v2181
  %2968 = vmatpush.bf16.msra.mxu0 %v2177
  %2969 = vmatpush.bf16.msra.mxu0 %v2173
  %2970 = vmatpush.bf16.msra.mxu0 %v2169
  %2971 = vmatpush.bf16.msra.mxu0 %v2165
  %2972 = vmatpush.bf16.msra.mxu0 %v2161
  %2973 = vmatpush.bf16.msra.mxu0 %v2157
  %2974 = vmatmul.bf16.gmra.mxu0 %v1050
  %v2975 = vpop.f32.mrf.mxu0
  %v2976 = vadd.f32 %v2962, %v2975
  %v2977 = vpop.f32.mrf.mxu0
  %v2978 = vadd.f32 %v2964, %v2977
  %2979 = vdwg.mxu0
  %2980 = vmatpush.bf16.msra.mxu0 %v2217
  %2981 = vmatpush.bf16.msra.mxu0 %v2213
  %2982 = vmatpush.bf16.msra.mxu0 %v2209
  %2983 = vmatpush.bf16.msra.mxu0 %v2205
  %2984 = vmatpush.bf16.msra.mxu0 %v2201
  %2985 = vmatpush.bf16.msra.mxu0 %v2197
  %2986 = vmatpush.bf16.msra.mxu0 %v2193
  %2987 = vmatpush.bf16.msra.mxu0 %v2189
  %2988 = vmatmul.bf16.gmra.mxu0 %v1051
  %v2989 = vpop.f32.mrf.mxu0
  %v2990 = vadd.f32 %v2976, %v2989
  %v2991 = vpop.f32.mrf.mxu0
  %v2992 = vadd.f32 %v2978, %v2991
  %2993 = vdwg.mxu0
  %2994 = vmatpush.bf16.msra.mxu0 %v2249
  %2995 = vmatpush.bf16.msra.mxu0 %v2245
  %2996 = vmatpush.bf16.msra.mxu0 %v2241
  %2997 = vmatpush.bf16.msra.mxu0 %v2237
  %2998 = vmatpush.bf16.msra.mxu0 %v2233
  %2999 = vmatpush.bf16.msra.mxu0 %v2229
  %3000 = vmatpush.bf16.msra.mxu0 %v2225
  %3001 = vmatpush.bf16.msra.mxu0 %v2221
  %3002 = vmatmul.bf16.gmra.mxu0 %v1052
  %v3003 = vpop.f32.mrf.mxu0
  %v3004 = vadd.f32 %v2990, %v3003
  %v3005 = vpop.f32.mrf.mxu0
  %v3006 = vadd.f32 %v2992, %v3005
  %3007 = vdwg.mxu0
  %3008 = vmatpush.bf16.msra.mxu0 %v2281
  %3009 = vmatpush.bf16.msra.mxu0 %v2277
  %3010 = vmatpush.bf16.msra.mxu0 %v2273
  %3011 = vmatpush.bf16.msra.mxu0 %v2269
  %3012 = vmatpush.bf16.msra.mxu0 %v2265
  %3013 = vmatpush.bf16.msra.mxu0 %v2261
  %3014 = vmatpush.bf16.msra.mxu0 %v2257
  %3015 = vmatpush.bf16.msra.mxu0 %v2253
  %3016 = vmatmul.bf16.gmra.mxu0 %v1053
  %v3017 = vpop.f32.mrf.mxu0
  %v3018 = vadd.f32 %v3004, %v3017
  %v3019 = vpop.f32.mrf.mxu0
  %v3020 = vadd.f32 %v3006, %v3019
  %3021 = vdwg.mxu0
  %3022 = vmatpush.bf16.msra.mxu0 %v2313
  %3023 = vmatpush.bf16.msra.mxu0 %v2309
  %3024 = vmatpush.bf16.msra.mxu0 %v2305
  %3025 = vmatpush.bf16.msra.mxu0 %v2301
  %3026 = vmatpush.bf16.msra.mxu0 %v2297
  %3027 = vmatpush.bf16.msra.mxu0 %v2293
  %3028 = vmatpush.bf16.msra.mxu0 %v2289
  %3029 = vmatpush.bf16.msra.mxu0 %v2285
  %3030 = vmatmul.bf16.gmra.mxu0 %v1054
  %v3031 = vpop.f32.mrf.mxu0
  %v3032 = vadd.f32 %v3018, %v3031
  %v3033 = vpop.f32.mrf.mxu0
  %v3034 = vadd.f32 %v3020, %v3033
  %3035 = vdwg.mxu0
  %3036 = vmatpush.bf16.msra.mxu0 %v2345
  %3037 = vmatpush.bf16.msra.mxu0 %v2341
  %3038 = vmatpush.bf16.msra.mxu0 %v2337
  %3039 = vmatpush.bf16.msra.mxu0 %v2333
  %3040 = vmatpush.bf16.msra.mxu0 %v2329
  %3041 = vmatpush.bf16.msra.mxu0 %v2325
  %3042 = vmatpush.bf16.msra.mxu0 %v2321
  %3043 = vmatpush.bf16.msra.mxu0 %v2317
  %3044 = vmatmul.bf16.gmra.mxu0 %v1055
  %v3045 = vpop.f32.mrf.mxu0
  %v3046 = vadd.f32 %v3032, %v3045
  %v3047 = vpop.f32.mrf.mxu0
  %v3048 = vadd.f32 %v3034, %v3047
  %3049 = vdwg.mxu0
  %v3050 = vpack.c.bf16 %v2712, %v2710
  %v3051 = vpack.c.bf16 %v2824, %v2822
  %v3052 = vpack.c.bf16 %v2936, %v2934
  %v3053 = vpack.c.bf16 %v3048, %v3046
  %v3054 = vld [vmem:[%s5] sm:$0xf]
  %v3055 = vld [vmem:[%s5 + $0x4] sm:$0xf]
  %v3056 = vld [vmem:[%s5 + $0x8] sm:$0xf]
  %v3057 = vld [vmem:[%s5 + $0xc] sm:$0xf]
  %v3058 = vld [vmem:[%s5 + $0x10] sm:$0xf]
  %v3059 = vld [vmem:[%s5 + $0x14] sm:$0xf]
  %v3060 = vld [vmem:[%s5 + $0x18] sm:$0xf]
  %v3061 = vld [vmem:[%s5 + $0x1c] sm:$0xf]
  %v3062 = vld [vmem:[%s5 + $0x20] sm:$0xf]
  %v3063 = vld [vmem:[%s5 + $0x24] sm:$0xf]
  %v3064 = vld [vmem:[%s5 + $0x28] sm:$0xf]
  %v3065 = vld [vmem:[%s5 + $0x2c] sm:$0xf]
  %v3066 = vld [vmem:[%s5 + $0x30] sm:$0xf]
  %v3067 = vld [vmem:[%s5 + $0x34] sm:$0xf]
  %v3068 = vld [vmem:[%s5 + $0x38] sm:$0xf]
  %v3069 = vld [vmem:[%s5 + $0x3c] sm:$0xf]
  %v3070 = vld [vmem:[%s5 + $0x40] sm:$0xf]
  %v3071 = vld [vmem:[%s5 + $0x44] sm:$0xf]
  %v3072 = vld [vmem:[%s5 + $0x48] sm:$0xf]
  %v3073 = vld [vmem:[%s5 + $0x4c] sm:$0xf]
  %v3074 = vld [vmem:[%s5 + $0x50] sm:$0xf]
  %v3075 = vld [vmem:[%s5 + $0x54] sm:$0xf]
  %v3076 = vld [vmem:[%s5 + $0x58] sm:$0xf]
  %v3077 = vld [vmem:[%s5 + $0x5c] sm:$0xf]
  %v3078 = vld [vmem:[%s5 + $0x60] sm:$0xf]
  %v3079 = vld [vmem:[%s5 + $0x64] sm:$0xf]
  %v3080 = vld [vmem:[%s5 + $0x68] sm:$0xf]
  %v3081 = vld [vmem:[%s5 + $0x6c] sm:$0xf]
  %v3082 = vld [vmem:[%s5 + $0x70] sm:$0xf]
  %v3083 = vld [vmem:[%s5 + $0x74] sm:$0xf]
  %v3084 = vld [vmem:[%s5 + $0x78] sm:$0xf]
  %v3085 = vld [vmem:[%s5 + $0x7c] sm:$0xf]
  %v3086 = vld [vmem:[%s5 + $0x80] sm:$0xf]
  %v3087 = vld [vmem:[%s5 + $0x84] sm:$0xf]
  %v3088 = vld [vmem:[%s5 + $0x88] sm:$0xf]
  %v3089 = vld [vmem:[%s5 + $0x8c] sm:$0xf]
  %v3090 = vld [vmem:[%s5 + $0x90] sm:$0xf]
  %v3091 = vld [vmem:[%s5 + $0x94] sm:$0xf]
  %v3092 = vld [vmem:[%s5 + $0x98] sm:$0xf]
  %v3093 = vld [vmem:[%s5 + $0x9c] sm:$0xf]
  %v3094 = vld [vmem:[%s5 + $0xa0] sm:$0xf]
  %v3095 = vld [vmem:[%s5 + $0xa4] sm:$0xf]
  %v3096 = vld [vmem:[%s5 + $0xa8] sm:$0xf]
  %v3097 = vld [vmem:[%s5 + $0xac] sm:$0xf]
  %v3098 = vld [vmem:[%s5 + $0xb0] sm:$0xf]
  %v3099 = vld [vmem:[%s5 + $0xb4] sm:$0xf]
  %v3100 = vld [vmem:[%s5 + $0xb8] sm:$0xf]
  %v3101 = vld [vmem:[%s5 + $0xbc] sm:$0xf]
  %v3102 = vld [vmem:[%s5 + $0xc0] sm:$0xf]
  %v3103 = vld [vmem:[%s5 + $0xc4] sm:$0xf]
  %v3104 = vld [vmem:[%s5 + $0xc8] sm:$0xf]
  %v3105 = vld [vmem:[%s5 + $0xcc] sm:$0xf]
  %v3106 = vld [vmem:[%s5 + $0xd0] sm:$0xf]
  %v3107 = vld [vmem:[%s5 + $0xd4] sm:$0xf]
  %v3108 = vld [vmem:[%s5 + $0xd8] sm:$0xf]
  %v3109 = vld [vmem:[%s5 + $0xdc] sm:$0xf]
  %v3110 = vld [vmem:[%s5 + $0xe0] sm:$0xf]
  %v3111 = vld [vmem:[%s5 + $0xe4] sm:$0xf]
  %v3112 = vld [vmem:[%s5 + $0xe8] sm:$0xf]
  %v3113 = vld [vmem:[%s5 + $0xec] sm:$0xf]
  %v3114 = vld [vmem:[%s5 + $0xf0] sm:$0xf]
  %v3115 = vld [vmem:[%s5 + $0xf4] sm:$0xf]
  %v3116 = vld [vmem:[%s5 + $0xf8] sm:$0xf]
  %v3117 = vld [vmem:[%s5 + $0xfc] sm:$0xf]
  %v3118 = vld [vmem:[%s6] sm:$0x1]
  %v3120 = vperm.slane %v3118, 0
  %v3186 = vunpack.c.l.b16 %v3054
  %v3187 = vunpack.c.l.b16 %v3055
  %v3188 = vunpack.c.l.b16 %v3056
  %v3189 = vunpack.c.l.b16 %v3057
  %v3190 = vunpack.c.l.b16 %v3058
  %v3191 = vunpack.c.l.b16 %v3059
  %v3192 = vunpack.c.l.b16 %v3060
  %v3193 = vunpack.c.l.b16 %v3061
  %v3194 = vunpack.c.l.b16 %v3062
  %v3195 = vunpack.c.l.b16 %v3063
  %v3196 = vunpack.c.l.b16 %v3064
  %v3197 = vunpack.c.l.b16 %v3065
  %v3198 = vunpack.c.l.b16 %v3066
  %v3199 = vunpack.c.l.b16 %v3067
  %v3200 = vunpack.c.l.b16 %v3068
  %v3201 = vunpack.c.l.b16 %v3069
  %v3202 = vunpack.c.l.b16 %v3070
  %v3203 = vunpack.c.l.b16 %v3071
  %v3204 = vunpack.c.l.b16 %v3072
  %v3205 = vunpack.c.l.b16 %v3073
  %v3206 = vunpack.c.l.b16 %v3074
  %v3207 = vunpack.c.l.b16 %v3075
  %v3208 = vunpack.c.l.b16 %v3076
  %v3209 = vunpack.c.l.b16 %v3077
  %v3210 = vunpack.c.l.b16 %v3078
  %v3211 = vunpack.c.l.b16 %v3079
  %v3212 = vunpack.c.l.b16 %v3080
  %v3213 = vunpack.c.l.b16 %v3081
  %v3214 = vunpack.c.l.b16 %v3082
  %v3215 = vunpack.c.l.b16 %v3083
  %v3216 = vunpack.c.l.b16 %v3084
  %v3217 = vunpack.c.l.b16 %v3085
  %v3218 = vunpack.c.l.b16 %v3086
  %v3219 = vunpack.c.l.b16 %v3087
  %v3220 = vunpack.c.l.b16 %v3088
  %v3221 = vunpack.c.l.b16 %v3089
  %v3222 = vunpack.c.l.b16 %v3090
  %v3223 = vunpack.c.l.b16 %v3091
  %v3224 = vunpack.c.l.b16 %v3092
  %v3225 = vunpack.c.l.b16 %v3093
  %v3226 = vunpack.c.l.b16 %v3094
  %v3227 = vunpack.c.l.b16 %v3095
  %v3228 = vunpack.c.l.b16 %v3096
  %v3229 = vunpack.c.l.b16 %v3097
  %v3230 = vunpack.c.l.b16 %v3098
  %v3231 = vunpack.c.l.b16 %v3099
  %v3232 = vunpack.c.l.b16 %v3100
  %v3233 = vunpack.c.l.b16 %v3101
  %v3234 = vunpack.c.l.b16 %v3102
  %v3235 = vunpack.c.l.b16 %v3103
  %v3236 = vunpack.c.l.b16 %v3104
  %v3237 = vunpack.c.l.b16 %v3105
  %v3238 = vunpack.c.l.b16 %v3106
  %v3239 = vunpack.c.l.b16 %v3107
  %v3240 = vunpack.c.l.b16 %v3108
  %v3241 = vunpack.c.l.b16 %v3109
  %v3242 = vunpack.c.l.b16 %v3110
  %v3243 = vunpack.c.l.b16 %v3111
  %v3244 = vunpack.c.l.b16 %v3112
  %v3245 = vunpack.c.l.b16 %v3113
  %v3246 = vunpack.c.l.b16 %v3114
  %v3247 = vunpack.c.l.b16 %v3115
  %v3248 = vunpack.c.l.b16 %v3116
  %v3249 = vunpack.c.l.b16 %v3117
  %v3250 = vpack.c.b16 %v3187, %v3186
  %v3251 = vpack.c.b16 %v3189, %v3188
  %v3252 = vpack.c.b16 %v3191, %v3190
  %v3253 = vpack.c.b16 %v3193, %v3192
  %v3254 = vpack.c.b16 %v3195, %v3194
  %v3255 = vpack.c.b16 %v3197, %v3196
  %v3256 = vpack.c.b16 %v3199, %v3198
  %v3257 = vpack.c.b16 %v3201, %v3200
  %v3258 = vpack.c.b16 %v3203, %v3202
  %v3259 = vpack.c.b16 %v3205, %v3204
  %v3260 = vpack.c.b16 %v3207, %v3206
  %v3261 = vpack.c.b16 %v3209, %v3208
  %v3262 = vpack.c.b16 %v3211, %v3210
  %v3263 = vpack.c.b16 %v3213, %v3212
  %v3264 = vpack.c.b16 %v3215, %v3214
  %v3265 = vpack.c.b16 %v3217, %v3216
  %v3266 = vpack.c.b16 %v3219, %v3218
  %v3267 = vpack.c.b16 %v3221, %v3220
  %v3268 = vpack.c.b16 %v3223, %v3222
  %v3269 = vpack.c.b16 %v3225, %v3224
  %v3270 = vpack.c.b16 %v3227, %v3226
  %v3271 = vpack.c.b16 %v3229, %v3228
  %v3272 = vpack.c.b16 %v3231, %v3230
  %v3273 = vpack.c.b16 %v3233, %v3232
  %v3274 = vpack.c.b16 %v3235, %v3234
  %v3275 = vpack.c.b16 %v3237, %v3236
  %v3276 = vpack.c.b16 %v3239, %v3238
  %v3277 = vpack.c.b16 %v3241, %v3240
  %v3278 = vpack.c.b16 %v3243, %v3242
  %v3279 = vpack.c.b16 %v3245, %v3244
  %v3280 = vpack.c.b16 %v3247, %v3246
  %v3281 = vpack.c.b16 %v3249, %v3248
  %3314 = vmatpush.bf16.msra.mxu0 %v3257
  %3315 = vmatpush.bf16.msra.mxu0 %v3256
  %3316 = vmatpush.bf16.msra.mxu0 %v3255
  %3317 = vmatpush.bf16.msra.mxu0 %v3254
  %3318 = vmatpush.bf16.msra.mxu0 %v3253
  %3319 = vmatpush.bf16.msra.mxu0 %v3252
  %3320 = vmatpush.bf16.msra.mxu0 %v3251
  %3321 = vmatpush.bf16.msra.mxu0 %v3250
  %3322 = vmatmul.bf16.gmra.mxu0 %v3050
  %v3323 = vpop.f32.mrf.mxu0
  %v3324 = vadd.f32 %v3120, %v3323
  %v3325 = vpop.f32.mrf.mxu0
  %v3326 = vadd.f32 %v3120, %v3325
  %3327 = vdwg.mxu0
  %3328 = vmatpush.bf16.msra.mxu0 %v3265
  %3329 = vmatpush.bf16.msra.mxu0 %v3264
  %3330 = vmatpush.bf16.msra.mxu0 %v3263
  %3331 = vmatpush.bf16.msra.mxu0 %v3262
  %3332 = vmatpush.bf16.msra.mxu0 %v3261
  %3333 = vmatpush.bf16.msra.mxu0 %v3260
  %3334 = vmatpush.bf16.msra.mxu0 %v3259
  %3335 = vmatpush.bf16.msra.mxu0 %v3258
  %3336 = vmatmul.bf16.gmra.mxu0 %v3051
  %v3337 = vpop.f32.mrf.mxu0
  %v3338 = vadd.f32 %v3324, %v3337
  %v3339 = vpop.f32.mrf.mxu0
  %v3340 = vadd.f32 %v3326, %v3339
  %3341 = vdwg.mxu0
  %3342 = vmatpush.bf16.msra.mxu0 %v3273
  %3343 = vmatpush.bf16.msra.mxu0 %v3272
  %3344 = vmatpush.bf16.msra.mxu0 %v3271
  %3345 = vmatpush.bf16.msra.mxu0 %v3270
  %3346 = vmatpush.bf16.msra.mxu0 %v3269
  %3347 = vmatpush.bf16.msra.mxu0 %v3268
  %3348 = vmatpush.bf16.msra.mxu0 %v3267
  %3349 = vmatpush.bf16.msra.mxu0 %v3266
  %3350 = vmatmul.bf16.gmra.mxu0 %v3052
  %v3351 = vpop.f32.mrf.mxu0
  %v3352 = vadd.f32 %v3338, %v3351
  %v3353 = vpop.f32.mrf.mxu0
  %v3354 = vadd.f32 %v3340, %v3353
  %3355 = vdwg.mxu0
  %3356 = vmatpush.bf16.msra.mxu0 %v3281
  %3357 = vmatpush.bf16.msra.mxu0 %v3280
  %3358 = vmatpush.bf16.msra.mxu0 %v3279
  %3359 = vmatpush.bf16.msra.mxu0 %v3278
  %3360 = vmatpush.bf16.msra.mxu0 %v3277
  %3361 = vmatpush.bf16.msra.mxu0 %v3276
  %3362 = vmatpush.bf16.msra.mxu0 %v3275
  %3363 = vmatpush.bf16.msra.mxu0 %v3274
  %3364 = vmatmul.bf16.gmra.mxu0 %v3053
  %v3365 = vpop.f32.mrf.mxu0
  %v3366 = vadd.f32 %v3352, %v3365
  %v3367 = vpop.f32.mrf.mxu0
  %v3368 = vadd.f32 %v3354, %v3367
  %3369 = vdwg.mxu0
  %3370 = vst [vmem:[%s7] sm:$0xff] %v3366
  %3371 = vst [vmem:[%s7 + $0x8] sm:$0xff] %v3368
  // Predicated region
  $region30: #{baseline_model1_forward.1} parent=0 // pred_check
    _
  $region31: #{baseline_model1_forward.1} parent=0 // pred_check_branch
    %3373 = sbr.rel (0) target = $region33
  $region32: #{baseline_model1_forward.1} parent=0 // pred_region
    _
  $region33: #{baseline_model1_forward.1} parent=0 // pred_fallthru
    _
  // Predicated region
  $region34: #{baseline_model1_forward.1} parent=0 // pred_check
    _
  $region35: #{baseline_model1_forward.1} parent=0 // pred_check_branch
    %3375 = sbr.rel (0) target = $region37
  $region36: #{baseline_model1_forward.1} parent=0 // pred_region
    _
  $region37: #{baseline_model1_forward.1} parent=0 // pred_fallthru
    _

</llo_original>
